<compile_context>
chip_gen: v7x
topology: tpu7x:2x2x1
jax: 0.10.0
libtpu: 0.0.40
codegen_flags: <defaults>
</compile_context>

<pallas_src>
import functools

import jax
import jax.numpy as jnp
from jax.experimental import pallas as pl
from jax.experimental.pallas import tpu as pltpu

K = 7        # conv kernel size
PAD = 3      # "same" padding for k=7, stride=1
XHALO = 8    # input halo rows pulled on each side of an L-tile (>= 2*PAD, 8-aligned)
LANE = 128


def _round_up(x, m):
    return ((x + m - 1) // m) * m


def basic_block1d_kernel(x_hbm, w1_ref, b1_ref, w2_ref, b2_ref, out_ref,
                         x_tile, copy_sem, *, seq_len, compute_dtype):
    # x_hbm:   (N, Lp + 2*XHALO, Cp)  padded input (compute_dtype), left in HBM
    # w1_ref:  (K*Cp, Cp)  conv1 weights, BN1 scale folded, tap-major im2col layout
    # b1_ref:  (1, Cp)     folded BN1 bias (f32)
    # w2_ref:  (K*Cp, Cp)  conv2 weights, BN2 scale folded
    # b2_ref:  (1, Cp)     folded BN2 bias (f32)
    # out_ref: (1, TL, Cp) output tile
    # x_tile:  (2, TL + 2*XHALO, Cp) compute_dtype double-buffered haloed input
    n = pl.program_id(0)
    j = pl.program_id(1)
    n_lt = pl.num_programs(1)
    TL = out_ref.shape[1]
    Cp = out_ref.shape[2]
    TLX = x_tile.shape[1]            # TL + 2*XHALO
    TLH = TL + 2 * PAD + 2           # intermediate rows, rounded to a multiple of 8
    OFF1 = XHALO - 2 * PAD           # = 2: offset of conv1 tap-0 inside the haloed tile

    slot = j % 2

    def start_fetch(jj, sl):
        start = pl.multiple_of(jj * TL, 16)
        pltpu.make_async_copy(
            x_hbm.at[n, pl.ds(start, TLX), :], x_tile.at[sl],
            copy_sem.at[sl]).start()

    # First tile of this batch element: issue its own fetch (synchronous).
    @pl.when(j == 0)
    def _():
        start_fetch(j, slot)         # j == 0, slot == 0 here

    # Prefetch the NEXT L-tile (same n) into the other slot -> DMA overlaps
    # with this tile's compute.  Never crosses an n boundary, so every started
    # DMA is waited even when the batch axis is sharded across TensorCores.
    @pl.when(j + 1 < n_lt)
    def _():
        start_fetch(j + 1, 1 - slot)

    # Wait for the current tile's DMA (started here if j==0, else at step j-1).
    start_cur = pl.multiple_of(j * TL, 16)
    pltpu.make_async_copy(
        x_hbm.at[n, pl.ds(start_cur, TLX), :], x_tile.at[slot],
        copy_sem.at[slot]).wait()

    xt = x_tile[slot]                                               # (TLX, Cp) bf16

    # ---- conv1: 7 taps fused into one lane/contraction-dense MXU matmul (im2col).
    #      xt is already in compute_dtype -> no per-tap cast.
    slab1 = jnp.concatenate(
        [xt[OFF1 + k:OFF1 + k + TLH, :] for k in range(K)], axis=1)  # (TLH, K*Cp)
    acc1 = jnp.dot(slab1, w1_ref[...], preferred_element_type=jnp.float32)

    # ---- bn1 (scale folded into w1) + relu in f32; dropout is identity in eval
    h = jnp.maximum(acc1 + b1_ref[...], 0.0)                        # (TLH, Cp) f32

    # h rows outside [0, L) act as conv2's zero "same" padding -> mask them
    s = j * TL - PAD + jax.lax.broadcasted_iota(jnp.int32, (TLH, 1), 0)
    h = jnp.where((s >= 0) & (s < seq_len), h, 0.0)

    # ---- conv2: same fused im2col matmul; cast ONCE, then slice the bf16 array
    h_bf = h.astype(compute_dtype)
    slab2 = jnp.concatenate([h_bf[k:k + TL, :] for k in range(K)], axis=1)
    acc2 = jnp.dot(slab2, w2_ref[...], preferred_element_type=jnp.float32)

    # ---- bn2 bias + identity shortcut (upcast to f32) + relu
    residual = xt[XHALO:XHALO + TL, :].astype(jnp.float32)          # from same tile
    out = jnp.maximum(acc2 + b2_ref[...] + residual, 0.0)
    out_ref[0] = out.astype(out_ref.dtype)


def basic_block1d(x_ncl, w1, bn1, w2, bn2, *, eps=1e-5, tl=1024,
                  compute_dtype=jnp.bfloat16, out_dtype=None):
    """x_ncl: (N, C, L) float32, PyTorch NCW layout.
       w1: (Cp, Cin, 7)  w2: (Cp, Cp, 7)   (PyTorch Conv1d weight layout)
       bn1/bn2: dicts with gamma, beta, mean, var of shape (Cp,).
       tl: L-tile size.  1024 keeps live VMEM well under v7x's 64 MiB; on
           v5e/v6e (128 MiB) tl=2048 amortizes grid-step overhead further."""
    N, Cin, L = x_ncl.shape
    Cout = w1.shape[0]
    assert Cout == Cin, "identity shortcut requires planes == inplanes"
    assert tl % 16 == 0
    if out_dtype is None:
        out_dtype = x_ncl.dtype

    # NOTE: Cp=128 only half-fills the 256-wide MXU output dim on v6e/v7x; for
    # production planes >= 256 keep the native channel width (don't split it).
    Cp = _round_up(Cin, LANE)                   # lane-dense channel padding
    TL = min(tl, _round_up(L, 16))              # L-tile size (16-aligned for bf16)
    nLT = -(-L // TL)                           # number of L tiles
    Lp = nLT * TL
    TLX = TL + 2 * XHALO
    TLH = TL + 2 * PAD + 2

    # ---- layout glue (plain JAX): NCW -> NLC, pad channels to Cp, pad L with
    #      XHALO zero rows on the left and (Lp + XHALO - L) on the right.
    #      Input HBM traffic is compute_dtype (bf16): halves bytes on v6e.
    x_nlc = jnp.transpose(x_ncl, (0, 2, 1)).astype(jnp.float32)     # (N, L, C)
    x_pad = jnp.pad(x_nlc, ((0, 0), (XHALO, Lp + XHALO - L),
                            (0, Cp - Cin))).astype(compute_dtype)

    # ---- fold BN (inference): scale goes into the conv weights, bias stays
    def fold(bn):
        scale = bn["gamma"] / jnp.sqrt(bn["var"] + eps)
        bias = bn["beta"] - bn["mean"] * scale
        return scale, bias

    s1, b1 = fold(bn1)
    s2, b2 = fold(bn2)

    def prep_w(w, scale):
        wf = w * scale[:, None, None]                       # (Cout, Cin, K), BN folded
        wk = jnp.transpose(wf, (2, 1, 0))                   # (K, Cin, Cout)
        wk = jnp.pad(wk, ((0, 0), (0, Cp - w.shape[1]), (0, Cp - w.shape[0])))
        return wk.reshape(K * Cp, Cp).astype(compute_dtype)  # tap-major im2col layout

    w1_r = prep_w(w1, s1)
    w2_r = prep_w(w2, s2)
    b1_r = jnp.pad(b1, (0, Cp - Cout)).reshape(1, Cp).astype(jnp.float32)
    b2_r = jnp.pad(b2, (0, Cp - Cout)).reshape(1, Cp).astype(jnp.float32)

    kernel = functools.partial(basic_block1d_kernel, seq_len=L,
                               compute_dtype=compute_dtype)

    isz_c = jnp.dtype(compute_dtype).itemsize
    isz_o = jnp.dtype(out_dtype).itemsize
    flops = 2 * 2 * K * Cp * Cp * Lp * N                       # two convs
    bytes_accessed = (x_pad.size * isz_c + N * Lp * Cp * isz_o
                      + (w1_r.size + w2_r.size) * isz_c + (b1_r.size + b2_r.size) * 4)

    # Live-VMEM estimate -> scoped limit (with headroom), capped for v7x safety.
    vmem_est = (2 * TLX * Cp * isz_c              # double-buffered haloed input tile
                + 2 * TLH * K * Cp * isz_c        # two im2col slabs
                + 2 * TLH * Cp * 4                # f32 acc / h
                + 2 * TL * Cp * isz_o             # double-buffered output block
                + 2 * 2 * K * Cp * Cp * isz_c     # double-buffered weight blocks
                + 4 * Cp * 4)
    vmem_limit = int(min(100 * 1024 * 1024,
                         max(32 * 1024 * 1024, 2 * vmem_est)))

    out_full = pl.pallas_call(
        kernel,
        out_shape=jax.ShapeDtypeStruct((N, Lp, Cp), out_dtype),
        grid=(N, nLT),
        in_specs=[
            pl.BlockSpec(memory_space=pl.ANY),                   # haloed x, manual DMA
            pl.BlockSpec((K * Cp, Cp), lambda n, j: (0, 0)),
            pl.BlockSpec((1, Cp), lambda n, j: (0, 0)),
            pl.BlockSpec((K * Cp, Cp), lambda n, j: (0, 0)),
            pl.BlockSpec((1, Cp), lambda n, j: (0, 0)),
        ],
        out_specs=pl.BlockSpec((1, TL, Cp), lambda n, j: (n, j, 0)),
        scratch_shapes=[
            pltpu.VMEM((2, TLX, Cp), compute_dtype),             # double buffer
            pltpu.SemaphoreType.DMA((2,)),
        ],
        compiler_params=pltpu.CompilerParams(
            # batch axis shards across v7x's 2 TensorCores; the L axis carries
            # the prefetch-DMA state, so it must be "arbitrary".
            dimension_semantics=("parallel", "arbitrary"),
            vmem_limit_bytes=vmem_limit),
        cost_estimate=pl.CostEstimate(flops=flops, transcendentals=0,
                                      bytes_accessed=bytes_accessed),
    )(x_pad, w1_r, b1_r, w2_r, b2_r)

    out_nlc = out_full[:, :L, :Cin]
    return jnp.transpose(out_nlc, (0, 2, 1)).astype(x_ncl.dtype)    # back to NCW


def reference_forward(x, w1, bn1, w2, bn2, *, eps=1e-5):
    dn = ("NCH", "OIH", "NCH")

    def bn_apply(h, bn):
        scale = bn["gamma"] / jnp.sqrt(bn["var"] + eps)
        bias = bn["beta"] - bn["mean"] * scale
        return h * scale[None, :, None] + bias[None, :, None]

    h = jax.lax.conv_general_dilated(x, w1, (1,), [(PAD, PAD)],
                                     dimension_numbers=dn)
    h = jnp.maximum(bn_apply(h, bn1), 0.0)
    h2 = jax.lax.conv_general_dilated(h, w2, (1,), [(PAD, PAD)],
                                      dimension_numbers=dn)
    h2 = bn_apply(h2, bn2)
    return jnp.maximum(h2 + x, 0.0)


if __name__ == "__main__":
    key = jax.random.PRNGKey(0)
    N, C, L = 2, 8, 96          # batch, channels (inplanes == planes), length

    ks = jax.random.split(key, 11)
    x = jax.random.normal(ks[0], (N, C, L), jnp.float32)

    w1 = 0.1 * jax.random.normal(ks[1], (C, C, K), jnp.float32)
    w2 = 0.1 * jax.random.normal(ks[2], (C, C, K), jnp.float32)

    bn1 = {
        "gamma": 1.0 + 0.1 * jax.random.normal(ks[3], (C,), jnp.float32),
        "beta": 0.1 * jax.random.normal(ks[4], (C,), jnp.float32),
        "mean": 0.1 * jax.random.normal(ks[5], (C,), jnp.float32),
        "var": 1.0 + 0.1 * jax.random.uniform(ks[6], (C,), jnp.float32),
    }
    bn2 = {
        "gamma": 1.0 + 0.1 * jax.random.normal(ks[7], (C,), jnp.float32),
        "beta": 0.1 * jax.random.normal(ks[8], (C,), jnp.float32),
        "mean": 0.1 * jax.random.normal(ks[9], (C,), jnp.float32),
        "var": 1.0 + 0.1 * jax.random.uniform(ks[10], (C,), jnp.float32),
    }

    ref = reference_forward(x, w1, bn1, w2, bn2)

    # tl=32 -> 3 L-tiles: exercises first / interior / last-tile halo masking
    # AND the double-buffered prefetch path.
    out = basic_block1d(x, w1, bn1, w2, bn2, tl=32)
    out = jax.block_until_ready(out)
    assert out.shape == (N, C, L)
    # bf16 HBM I/O + bf16 matmuls with f32 accumulation -> loose-ish tolerance.
    assert jnp.allclose(out, ref, atol=4e-2, rtol=4e-2), \
        f"max err {jnp.max(jnp.abs(out - ref))}"

    # default tl -> single-tile-per-batch-element path (no prefetch issued).
    out2 = basic_block1d(x, w1, bn1, w2, bn2)
    out2 = jax.block_until_ready(out2)
    assert jnp.allclose(out2, ref, atol=4e-2, rtol=4e-2), \
        f"max err {jnp.max(jnp.abs(out2 - ref))}"

    print("KERNEL_OK")
</pallas_src>

<mosaic_0001>
module attributes {stable_mosaic.version = 11 : i64} {
  func.func @basic_block1d_kernel(%arg0: i32, %arg1: i32, %arg2: memref<2x112x128xbf16, #tpu.memory_space<any>>, %arg3: memref<896x128xbf16, #tpu.memory_space<vmem>>, %arg4: memref<1x128xf32, #tpu.memory_space<vmem>>, %arg5: memref<896x128xbf16, #tpu.memory_space<vmem>>, %arg6: memref<1x128xf32, #tpu.memory_space<vmem>>, %arg7: memref<1x32x128xf32, #tpu.memory_space<vmem>>, %arg8: memref<2x48x128xbf16, #tpu.memory_space<vmem>>, %arg9: memref<2x!tpu.dma_semaphore, #tpu.memory_space<semaphore_mem>>) attributes {dimension_semantics = [#tpu.dimension_semantics<parallel>, #tpu.dimension_semantics<arbitrary>], iteration_bounds = array<i64: 2, 3>, scalar_prefetch = 0 : i64, scratch_operands = 2 : i64, tpu.core_type = #tpu.core_type<tc>, window_params = [{}, {pipeline_mode = #tpu.pipeline_mode<synchronous>, transform_indices = @transform_1, window_bounds = array<i64: 896, 128>}, {pipeline_mode = #tpu.pipeline_mode<synchronous>, transform_indices = @transform_2, window_bounds = array<i64: 1, 128>}, {pipeline_mode = #tpu.pipeline_mode<synchronous>, transform_indices = @transform_3, window_bounds = array<i64: 896, 128>}, {pipeline_mode = #tpu.pipeline_mode<synchronous>, transform_indices = @transform_4, window_bounds = array<i64: 1, 128>}, {transform_indices = @transform_5, window_bounds = array<i64: 1, 32, 128>}]} {
    %c2_i32 = arith.constant 2 : i32
    %c0_i32 = arith.constant 0 : i32
    %0 = arith.cmpi eq, %c2_i32, %c0_i32 : i32
    %c1_i32 = arith.constant 1 : i32
    %1 = arith.select %0, %c1_i32, %c2_i32 : i32
    %2 = arith.remsi %arg1, %1 : i32
    %c0_i32_0 = arith.constant 0 : i32
    %3 = arith.cmpi ne, %2, %c0_i32_0 : i32
    %c0_i32_1 = arith.constant 0 : i32
    %4 = arith.cmpi slt, %2, %c0_i32_1 : i32
    %c0_i32_2 = arith.constant 0 : i32
    %5 = arith.cmpi slt, %1, %c0_i32_2 : i32
    %6 = arith.xori %4, %5 : i1
    %7 = arith.andi %6, %3 : i1
    %8 = arith.addi %2, %1 : i32
    %9 = arith.select %7, %8, %2 : i32
    %c0_i32_3 = arith.constant 0 : i32
    %10 = arith.cmpi eq, %arg1, %c0_i32_3 : i32
    %11 = arith.extui %10 : i1 to i32
    %c0_i32_4 = arith.constant 0 : i32
    %12 = arith.cmpi ne, %11, %c0_i32_4 : i32
    scf.if %12 {
      %c32_i32_29 = arith.constant 32 : i32
      %79 = arith.muli %arg1, %c32_i32_29 : i32
      %80 = tpu.assume_multiple %79, 16 : i32
      %c0_i32_30 = arith.constant 0 : i32
      %81 = tpu.memref_slice %arg2[%arg0, %80, %c0_i32_30] : memref<2x112x128xbf16, #tpu.memory_space<any>> -> memref<1x48x128xbf16, #tpu.memory_space<any>>
      %82 = tpu.memref_squeeze %81 : memref<1x48x128xbf16, #tpu.memory_space<any>> -> memref<48x128xbf16, #tpu.memory_space<any>>
      %c0_i32_31 = arith.constant 0 : i32
      %c0_i32_32 = arith.constant 0 : i32
      %83 = tpu.memref_slice %arg8[%9, %c0_i32_31, %c0_i32_32] : memref<2x48x128xbf16, #tpu.memory_space<vmem>> -> memref<1x48x128xbf16, #tpu.memory_space<vmem>>
      %84 = tpu.memref_squeeze %83 : memref<1x48x128xbf16, #tpu.memory_space<vmem>> -> memref<48x128xbf16, #tpu.memory_space<vmem>>
      %85 = tpu.memref_slice %arg9[%9] : memref<2x!tpu.dma_semaphore, #tpu.memory_space<semaphore_mem>> -> memref<1x!tpu.dma_semaphore, #tpu.memory_space<semaphore_mem>>
      %86 = tpu.memref_squeeze %85 : memref<1x!tpu.dma_semaphore, #tpu.memory_space<semaphore_mem>> -> memref<!tpu.dma_semaphore, #tpu.memory_space<semaphore_mem>>
      tpu.enqueue_dma source(%82 : memref<48x128xbf16, #tpu.memory_space<any>>) target(%84 : memref<48x128xbf16, #tpu.memory_space<vmem>>) target_semaphore(%86 : memref<!tpu.dma_semaphore, #tpu.memory_space<semaphore_mem>>)
    } else {
    }
    %c1_i32_5 = arith.constant 1 : i32
    %13 = arith.addi %arg1, %c1_i32_5 : i32
    %c3_i32 = arith.constant 3 : i32
    %14 = arith.cmpi slt, %13, %c3_i32 : i32
    %15 = arith.extui %14 : i1 to i32
    %c0_i32_6 = arith.constant 0 : i32
    %16 = arith.cmpi ne, %15, %c0_i32_6 : i32
    scf.if %16 {
      %c1_i32_29 = arith.constant 1 : i32
      %79 = arith.addi %arg1, %c1_i32_29 : i32
      %c1_i32_30 = arith.constant 1 : i32
      %80 = arith.subi %c1_i32_30, %9 : i32
      %c32_i32_31 = arith.constant 32 : i32
      %81 = arith.muli %79, %c32_i32_31 : i32
      %82 = tpu.assume_multiple %81, 16 : i32
      %c0_i32_32 = arith.constant 0 : i32
      %83 = tpu.memref_slice %arg2[%arg0, %82, %c0_i32_32] : memref<2x112x128xbf16, #tpu.memory_space<any>> -> memref<1x48x128xbf16, #tpu.memory_space<any>>
      %84 = tpu.memref_squeeze %83 : memref<1x48x128xbf16, #tpu.memory_space<any>> -> memref<48x128xbf16, #tpu.memory_space<any>>
      %c0_i32_33 = arith.constant 0 : i32
      %c0_i32_34 = arith.constant 0 : i32
      %85 = tpu.memref_slice %arg8[%80, %c0_i32_33, %c0_i32_34] : memref<2x48x128xbf16, #tpu.memory_space<vmem>> -> memref<1x48x128xbf16, #tpu.memory_space<vmem>>
      %86 = tpu.memref_squeeze %85 : memref<1x48x128xbf16, #tpu.memory_space<vmem>> -> memref<48x128xbf16, #tpu.memory_space<vmem>>
      %87 = tpu.memref_slice %arg9[%80] : memref<2x!tpu.dma_semaphore, #tpu.memory_space<semaphore_mem>> -> memref<1x!tpu.dma_semaphore, #tpu.memory_space<semaphore_mem>>
      %88 = tpu.memref_squeeze %87 : memref<1x!tpu.dma_semaphore, #tpu.memory_space<semaphore_mem>> -> memref<!tpu.dma_semaphore, #tpu.memory_space<semaphore_mem>>
      tpu.enqueue_dma source(%84 : memref<48x128xbf16, #tpu.memory_space<any>>) target(%86 : memref<48x128xbf16, #tpu.memory_space<vmem>>) target_semaphore(%88 : memref<!tpu.dma_semaphore, #tpu.memory_space<semaphore_mem>>)
    } else {
    }
    %c32_i32 = arith.constant 32 : i32
    %17 = arith.muli %arg1, %c32_i32 : i32
    %18 = tpu.assume_multiple %17, 16 : i32
    %c0_i32_7 = arith.constant 0 : i32
    %19 = tpu.memref_slice %arg2[%arg0, %18, %c0_i32_7] : memref<2x112x128xbf16, #tpu.memory_space<any>> -> memref<1x48x128xbf16, #tpu.memory_space<any>>
    %20 = tpu.memref_squeeze %19 : memref<1x48x128xbf16, #tpu.memory_space<any>> -> memref<48x128xbf16, #tpu.memory_space<any>>
    %c0_i32_8 = arith.constant 0 : i32
    %c0_i32_9 = arith.constant 0 : i32
    %21 = tpu.memref_slice %arg8[%9, %c0_i32_8, %c0_i32_9] : memref<2x48x128xbf16, #tpu.memory_space<vmem>> -> memref<1x48x128xbf16, #tpu.memory_space<vmem>>
    %22 = tpu.memref_squeeze %21 : memref<1x48x128xbf16, #tpu.memory_space<vmem>> -> memref<48x128xbf16, #tpu.memory_space<vmem>>
    %23 = tpu.memref_slice %arg9[%9] : memref<2x!tpu.dma_semaphore, #tpu.memory_space<semaphore_mem>> -> memref<1x!tpu.dma_semaphore, #tpu.memory_space<semaphore_mem>>
    %24 = tpu.memref_squeeze %23 : memref<1x!tpu.dma_semaphore, #tpu.memory_space<semaphore_mem>> -> memref<!tpu.dma_semaphore, #tpu.memory_space<semaphore_mem>>
    tpu.wait_dma2 semaphore(%24 : memref<!tpu.dma_semaphore, #tpu.memory_space<semaphore_mem>>) src(%20 : memref<48x128xbf16, #tpu.memory_space<any>>) dst(%22 : memref<48x128xbf16, #tpu.memory_space<vmem>>)
    %25 = arith.index_cast %9 : i32 to index
    %c0 = arith.constant 0 : index
    %c0_10 = arith.constant 0 : index
    %26 = vector.load %arg8[%25, %c0, %c0_10] : memref<2x48x128xbf16, #tpu.memory_space<vmem>>, vector<1x48x128xbf16>
    %27 = vector.shape_cast %26 : vector<1x48x128xbf16> to vector<48x128xbf16>
    %28 = vector.extract_strided_slice %27 {offsets = [2, 0], sizes = [40, 128], strides = [1, 1]} : vector<48x128xbf16> to vector<40x128xbf16>
    %29 = vector.extract_strided_slice %27 {offsets = [3, 0], sizes = [40, 128], strides = [1, 1]} : vector<48x128xbf16> to vector<40x128xbf16>
    %30 = vector.extract_strided_slice %27 {offsets = [4, 0], sizes = [40, 128], strides = [1, 1]} : vector<48x128xbf16> to vector<40x128xbf16>
    %31 = vector.extract_strided_slice %27 {offsets = [5, 0], sizes = [40, 128], strides = [1, 1]} : vector<48x128xbf16> to vector<40x128xbf16>
    %32 = vector.extract_strided_slice %27 {offsets = [6, 0], sizes = [40, 128], strides = [1, 1]} : vector<48x128xbf16> to vector<40x128xbf16>
    %33 = vector.extract_strided_slice %27 {offsets = [7, 0], sizes = [40, 128], strides = [1, 1]} : vector<48x128xbf16> to vector<40x128xbf16>
    %34 = vector.extract_strided_slice %27 {offsets = [8, 0], sizes = [40, 128], strides = [1, 1]} : vector<48x128xbf16> to vector<40x128xbf16>
    %35 = tpu.concatenate %28, %29, %30, %31, %32, %33, %34 in 1 : vector<40x128xbf16>, vector<40x128xbf16>, vector<40x128xbf16>, vector<40x128xbf16>, vector<40x128xbf16>, vector<40x128xbf16>, vector<40x128xbf16> -> vector<40x896xbf16>
    %c0_11 = arith.constant 0 : index
    %c0_12 = arith.constant 0 : index
    %36 = vector.load %arg3[%c0_11, %c0_12] : memref<896x128xbf16, #tpu.memory_space<vmem>>, vector<896x128xbf16>
    %cst = arith.constant dense<0.000000e+00> : vector<40x128xf32>
    %37 = tpu.matmul %35, %36, %cst {dimension_numbers = #tpu.dot_dimension_numbers<[1], [0], [0], [1], [0, 0, 1, 1], [], []>} : vector<40x896xbf16>, vector<896x128xbf16>, vector<40x128xf32> -> vector<40x128xf32>
    %c0_13 = arith.constant 0 : index
    %c0_14 = arith.constant 0 : index
    %38 = vector.load %arg4[%c0_13, %c0_14] : memref<1x128xf32, #tpu.memory_space<vmem>>, vector<1x128xf32>
    %39 = vector.broadcast %38 : vector<1x128xf32> to vector<40x128xf32>
    %40 = arith.addf %37, %39 : vector<40x128xf32>
    %cst_15 = arith.constant 0.000000e+00 : f32
    %41 = vector.broadcast %cst_15 : f32 to vector<40x128xf32>
    %42 = arith.maximumf %40, %41 : vector<40x128xf32>
    %c32_i32_16 = arith.constant 32 : i32
    %43 = arith.muli %arg1, %c32_i32_16 : i32
    %c3_i32_17 = arith.constant 3 : i32
    %44 = arith.subi %43, %c3_i32_17 : i32
    %45 = tpu.iota {dimensions = array<i32: 0>} : vector<40x1xi32>
    %46 = vector.broadcast %44 : i32 to vector<40x1xi32>
    %47 = arith.addi %46, %45 : vector<40x1xi32>
    %c0_i32_18 = arith.constant 0 : i32
    %48 = vector.broadcast %c0_i32_18 : i32 to vector<40x1xi32>
    %49 = arith.cmpi sge, %47, %48 : vector<40x1xi32>
    %c96_i32 = arith.constant 96 : i32
    %50 = vector.broadcast %c96_i32 : i32 to vector<40x1xi32>
    %51 = arith.cmpi slt, %47, %50 : vector<40x1xi32>
    %52 = arith.andi %49, %51 : vector<40x1xi1>
    %cst_19 = arith.constant 0.000000e+00 : f32
    %53 = vector.shape_cast %52 : vector<40x1xi1> to vector<40x1xi1>
    %54 = vector.broadcast %53 : vector<40x1xi1> to vector<40x128xi1>
    %55 = vector.broadcast %cst_19 : f32 to vector<40x128xf32>
    %56 = arith.select %54, %42, %55 : vector<40x128xi1>, vector<40x128xf32>
    %57 = arith.truncf %56 : vector<40x128xf32> to vector<40x128xbf16>
    %58 = vector.extract_strided_slice %57 {offsets = [0, 0], sizes = [32, 128], strides = [1, 1]} : vector<40x128xbf16> to vector<32x128xbf16>
    %59 = vector.extract_strided_slice %57 {offsets = [1, 0], sizes = [32, 128], strides = [1, 1]} : vector<40x128xbf16> to vector<32x128xbf16>
    %60 = vector.extract_strided_slice %57 {offsets = [2, 0], sizes = [32, 128], strides = [1, 1]} : vector<40x128xbf16> to vector<32x128xbf16>
    %61 = vector.extract_strided_slice %57 {offsets = [3, 0], sizes = [32, 128], strides = [1, 1]} : vector<40x128xbf16> to vector<32x128xbf16>
    %62 = vector.extract_strided_slice %57 {offsets = [4, 0], sizes = [32, 128], strides = [1, 1]} : vector<40x128xbf16> to vector<32x128xbf16>
    %63 = vector.extract_strided_slice %57 {offsets = [5, 0], sizes = [32, 128], strides = [1, 1]} : vector<40x128xbf16> to vector<32x128xbf16>
    %64 = vector.extract_strided_slice %57 {offsets = [6, 0], sizes = [32, 128], strides = [1, 1]} : vector<40x128xbf16> to vector<32x128xbf16>
    %65 = tpu.concatenate %58, %59, %60, %61, %62, %63, %64 in 1 : vector<32x128xbf16>, vector<32x128xbf16>, vector<32x128xbf16>, vector<32x128xbf16>, vector<32x128xbf16>, vector<32x128xbf16>, vector<32x128xbf16> -> vector<32x896xbf16>
    %c0_20 = arith.constant 0 : index
    %c0_21 = arith.constant 0 : index
    %66 = vector.load %arg5[%c0_20, %c0_21] : memref<896x128xbf16, #tpu.memory_space<vmem>>, vector<896x128xbf16>
    %cst_22 = arith.constant dense<0.000000e+00> : vector<32x128xf32>
    %67 = tpu.matmul %65, %66, %cst_22 {dimension_numbers = #tpu.dot_dimension_numbers<[1], [0], [0], [1], [0, 0, 1, 1], [], []>} : vector<32x896xbf16>, vector<896x128xbf16>, vector<32x128xf32> -> vector<32x128xf32>
    %68 = vector.extract_strided_slice %27 {offsets = [8, 0], sizes = [32, 128], strides = [1, 1]} : vector<48x128xbf16> to vector<32x128xbf16>
    %69 = arith.extf %68 : vector<32x128xbf16> to vector<32x128xf32>
    %c0_23 = arith.constant 0 : index
    %c0_24 = arith.constant 0 : index
    %70 = vector.load %arg6[%c0_23, %c0_24] : memref<1x128xf32, #tpu.memory_space<vmem>>, vector<1x128xf32>
    %71 = vector.broadcast %70 : vector<1x128xf32> to vector<32x128xf32>
    %72 = arith.addf %67, %71 : vector<32x128xf32>
    %73 = arith.addf %72, %69 : vector<32x128xf32>
    %cst_25 = arith.constant 0.000000e+00 : f32
    %74 = vector.broadcast %cst_25 : f32 to vector<32x128xf32>
    %75 = arith.maximumf %73, %74 : vector<32x128xf32>
    %c0_26 = arith.constant 0 : index
    %c0_27 = arith.constant 0 : index
    %c0_28 = arith.constant 0 : index
    %76 = vector.load %arg7[%c0_26, %c0_27, %c0_28] : memref<1x32x128xf32, #tpu.memory_space<vmem>>, vector<1x32x128xf32>
    %77 = vector.shape_cast %76 : vector<1x32x128xf32> to vector<32x128xf32>
    %78 = vector.shape_cast %75 : vector<32x128xf32> to vector<1x32x128xf32>
    tpu.vector_store %arg7[%c0_26, %c0_27, %c0_28], %78 {strides = array<i32>} : memref<1x32x128xf32, #tpu.memory_space<vmem>>, vector<1x32x128xf32>,
    return
  }
  func.func @transform_1(%arg0: i32, %arg1: i32) -> (i32, i32) {
    %c0_i32 = arith.constant 0 : i32
    %c0_i32_0 = arith.constant 0 : i32
    %c0_i32_1 = arith.constant 0 : i32
    return %c0_i32, %c0_i32_0 : i32, i32
  }
  func.func @transform_2(%arg0: i32, %arg1: i32) -> (i32, i32) {
    %c0_i32 = arith.constant 0 : i32
    %c0_i32_0 = arith.constant 0 : i32
    %c0_i32_1 = arith.constant 0 : i32
    return %c0_i32, %c0_i32_0 : i32, i32
  }
  func.func @transform_3(%arg0: i32, %arg1: i32) -> (i32, i32) {
    %c0_i32 = arith.constant 0 : i32
    %c0_i32_0 = arith.constant 0 : i32
    %c0_i32_1 = arith.constant 0 : i32
    return %c0_i32, %c0_i32_0 : i32, i32
  }
  func.func @transform_4(%arg0: i32, %arg1: i32) -> (i32, i32) {
    %c0_i32 = arith.constant 0 : i32
    %c0_i32_0 = arith.constant 0 : i32
    %c0_i32_1 = arith.constant 0 : i32
    return %c0_i32, %c0_i32_0 : i32, i32
  }
  func.func @transform_5(%arg0: i32, %arg1: i32) -> (i32, i32, i32) {
    %c0_i32 = arith.constant 0 : i32
    %c0_i32_0 = arith.constant 0 : i32
    return %arg0, %arg1, %c0_i32 : i32, i32, i32
  }
}

</mosaic_0001>

<llo_original>
// kernel: tpu_custom_call.1
$region0: #{tpu_custom_call.1}
  #allocation0 [shape = 'u32[]', space=smem, size = 0x4, offset = 0x4, fixed_abs, tag = 'smem constant byte address 0x4 - core index']
  #allocation1 [shape = 'u32[144,128]{1,0:T(1,128)}', space=vmem, size = 0x12000, scoped, tag = 'internal scratch']
  #allocation2 [shape = 'bf16[2,48,128]{2,1,0:T(16,128)(2,1)}', space=vmem, size = 0x6000, scoped, tag = 'scratch operand']
  #allocation3 [shape = 's32[2]{0}', space=sflag, size = 0x8, scoped, tag = 'scratch operand']
  #allocation10 [shape = 's32[]', space=sflag, size = 0x4, offset = 0, fixed_abs, tag = 'sflag constant byte address 0x0 - dummy sync flag']
  #allocation11 [shape = 's32[]', space=sflag, size = 0x4, offset = 0, fixed_abs, tag = 'sflag constant byte address 0x0 - dummy sync flag']
  #allocation12 [shape = 'u32[]', space=smem, size = 0x4, offset = 0x44, fixed_abs, tag = 'smem constant byte address 0x44 - assertion arg 0']
  #allocation13 [shape = 'u32[]', space=smem, size = 0x4, offset = 0x48, fixed_abs, tag = 'smem constant byte address 0x48 - assertion arg 1']
  #allocation14 [shape = 's32[]', space=sflag, size = 0x4, offset = 0, fixed_abs, tag = 'sflag constant byte address 0x0 - dummy sync flag']
  #allocation15 [shape = 's32[]', space=sflag, size = 0x4, offset = 0, fixed_abs, tag = 'sflag constant byte address 0x0 - dummy sync flag']
  %s0 = inlined_call_operand.hbm [shape: bf16[2,112,128], index: 0, kind: input, shape index: {}]
  %s1 = inlined_call_operand.hbm [shape: bf16[896,128], index: 1, kind: input, shape index: {}]
  %s2 = inlined_call_operand.vmem [shape: f32[1,128], index: 2, kind: input, shape index: {}]
  %s3 = inlined_call_operand.hbm [shape: bf16[896,128], index: 3, kind: input, shape index: {}]
  %s4 = inlined_call_operand.vmem [shape: f32[1,128], index: 4, kind: input, shape index: {}]
  %s5 = inlined_call_operand.hbm [shape: f32[2,96,128], index: 5, kind: output, shape index: {}]
  %s6 = sld [smem:[#allocation0]]
  $region73: #{tpu_custom_call.1} parent=0
    _
  %s8 = ssub.s32 1, %s6
  %s9 = scalar_select 0, %s8, %s6
  $region1: #{tpu_custom_call.1} parent=0
    #allocation4 [shape = 'u8[229376]{0}', space=vmem, size = 0x38000, scoped, tag = 'input window, operand 1, single buffered']
    #allocation5 [shape = 's32[2]{0}', space=sflag, size = 0x8, scoped, tag = 'scoped memory for tpu_custom_call.1']
    #allocation6 [shape = 's32[2]{0}', space=sflag, size = 0x8, scoped, tag = 'scoped memory for tpu_custom_call.1']
    #allocation7 [shape = 'u8[229376]{0}', space=vmem, size = 0x38000, scoped, tag = 'input window, operand 3, single buffered']
    #allocation8 [shape = 's32[1]{0}', space=sflag, size = 0x4, scoped, tag = 'scoped memory for tpu_custom_call.1']
    #allocation9 [shape = 'u8[32768]{0}', space=vmem, size = 0x8000, scoped, tag = 'output window, operand 0']
    %10 = vsyncpa [#allocation5], 0
    %11 = vsyncpa [#allocation8], 0
    %12 = vsyncpa [#allocation6], 0
    %s13 = scalar_lea.sflag [#allocation6], 1
    %14 = vsyncpa %s13, 0
    loop: start=0, step=1, limit=8
    $region2: #{tpu_custom_call.1} parent=1 // loop_pre_header
      _
    $region3: #{tpu_custom_call.1} parent=1 // loop_header
      %s16 = sphi 0, %s20
      %p17 = scmp.ge.s32.totalorder %s16, 8
      %s23 = sphi 0, %s35
      %s24 = sphi 0, %s31
      %s25 = sphi 0, %s23
      %s26 = sphi 0, %s24
      %s27 = sphi 0, %s25
      %s28 = sphi 0, %s26
      %s36 = sphi 0, %s36
      %s38 = sphi 0, %s36
      %s39 = sphi 0, %s38
      %s53 = sphi 0, %s39
      %s57 = sphi 0, %s57
      %s59 = sphi 0, %s57
      %s60 = sphi 0, %s59
      %s74 = sphi 0, %s60
      %s78 = sphi 0, %s78
      %s80 = sphi 0, %s78
      %s81 = sphi 0, %s80
      %s95 = sphi 0, %s81
      %s99 = sphi 0, %s99
      %s101 = sphi 0, %s99
      %s102 = sphi 0, %s101
      %s116 = sphi 0, %s102
      %s124 = sphi 0, %s126
      %s127 = sphi 0, %s124
      %s128 = sphi 0, %s127
      %s144 = sphi 0, %s128
    $region4: #{tpu_custom_call.1} parent=1 // loop_header_branch
      %19 = sbr.rel (%p17) target = $region8
    $region5: #{tpu_custom_call.1} parent=1 // loop_body
      %s21 = ssub.s32 %s16, 1
      %s22 = ssub.s32 %s16, 2
      %s29 = sadd.s32 1, %s24
      %p30 = scmp.ge.s32.totalorder %s29, 3
      %s31 = scalar_select %p30, 0, %s29
      %s32 = sadd.s32 1, %s23
      %s33 = scalar_select %p30, %s32, %s23
      %p34 = scmp.ge.s32.totalorder %s33, 2
      %s35 = scalar_select %p34, 0, %s33
      %s37 = sadd.s32 %s36, 1
      %p40 = scmp.eq.s32.totalorder %s16, 5
      %p41 = scmp.ne.s32.totalorder %s36, %s38
      %p42 = scmp.eq.s32.totalorder %s16, 0
      %p43 = por %p41, %p42
      %p44 = scmp.ne.s32.totalorder %s36, %s38
      %p45 = scmp.eq.s32.totalorder %s21, 5
      %p46 = por %p44, %p45
      %p47 = scmp.ne.s32.totalorder %s38, %s39
      %p48 = scmp.eq.s32.totalorder %s21, 0
      %p49 = por %p47, %p48
      %p50 = scmp.ne.s32.totalorder %s38, %s39
      %p51 = scmp.eq.s32.totalorder %s22, 5
      %p52 = por %p50, %p51
      %p54 = scmp.ne.s32.totalorder %s39, %s53
      %p55 = scmp.eq.s32.totalorder %s22, 0
      %p56 = por %p54, %p55
      %s58 = sadd.s32 %s57, 1
      %p61 = scmp.eq.s32.totalorder %s16, 5
      %p62 = scmp.ne.s32.totalorder %s57, %s59
      %p63 = scmp.eq.s32.totalorder %s16, 0
      %p64 = por %p62, %p63
      %p65 = scmp.ne.s32.totalorder %s57, %s59
      %p66 = scmp.eq.s32.totalorder %s21, 5
      %p67 = por %p65, %p66
      %p68 = scmp.ne.s32.totalorder %s59, %s60
      %p69 = scmp.eq.s32.totalorder %s21, 0
      %p70 = por %p68, %p69
      %p71 = scmp.ne.s32.totalorder %s59, %s60
      %p72 = scmp.eq.s32.totalorder %s22, 5
      %p73 = por %p71, %p72
      %p75 = scmp.ne.s32.totalorder %s60, %s74
      %p76 = scmp.eq.s32.totalorder %s22, 0
      %p77 = por %p75, %p76
      %s79 = sadd.s32 %s78, 1
      %p82 = scmp.eq.s32.totalorder %s16, 5
      %p83 = scmp.ne.s32.totalorder %s78, %s80
      %p84 = scmp.eq.s32.totalorder %s16, 0
      %p85 = por %p83, %p84
      %p86 = scmp.ne.s32.totalorder %s78, %s80
      %p87 = scmp.eq.s32.totalorder %s21, 5
      %p88 = por %p86, %p87
      %p89 = scmp.ne.s32.totalorder %s80, %s81
      %p90 = scmp.eq.s32.totalorder %s21, 0
      %p91 = por %p89, %p90
      %p92 = scmp.ne.s32.totalorder %s80, %s81
      %p93 = scmp.eq.s32.totalorder %s22, 5
      %p94 = por %p92, %p93
      %p96 = scmp.ne.s32.totalorder %s81, %s95
      %p97 = scmp.eq.s32.totalorder %s22, 0
      %p98 = por %p96, %p97
      %s100 = sadd.s32 %s99, 1
      %p103 = scmp.eq.s32.totalorder %s16, 5
      %p104 = scmp.ne.s32.totalorder %s99, %s101
      %p105 = scmp.eq.s32.totalorder %s16, 0
      %p106 = por %p104, %p105
      %p107 = scmp.ne.s32.totalorder %s99, %s101
      %p108 = scmp.eq.s32.totalorder %s21, 5
      %p109 = por %p107, %p108
      %p110 = scmp.ne.s32.totalorder %s101, %s102
      %p111 = scmp.eq.s32.totalorder %s21, 0
      %p112 = por %p110, %p111
      %p113 = scmp.ne.s32.totalorder %s101, %s102
      %p114 = scmp.eq.s32.totalorder %s22, 5
      %p115 = por %p113, %p114
      %p117 = scmp.ne.s32.totalorder %s102, %s116
      %p118 = scmp.eq.s32.totalorder %s22, 0
      %p119 = por %p117, %p118
      %s120 = ssub.s32 %s23, %s35
      %s121 = ssub.s32 %s24, %s31
      %s122 = sor.u32 %s120, %s121
      %p123 = scmp.eq.s32.totalorder %s122, 0
      %s125 = sadd.s32 %s124, 1
      %s126 = scalar_select %p123, %s124, %s125
      %p129 = pneg %p123
      %p130 = scmp.eq.s32.totalorder %s16, 5
      %p131 = por %p129, %p130
      %p132 = scmp.ne.s32.totalorder %s124, %s127
      %p133 = scmp.eq.s32.totalorder %s16, 0
      %p134 = por %p132, %p133
      %p135 = scmp.ne.s32.totalorder %s124, %s127
      %p136 = scmp.eq.s32.totalorder %s21, 5
      %p137 = por %p135, %p136
      %p138 = scmp.ne.s32.totalorder %s127, %s128
      %p139 = scmp.eq.s32.totalorder %s21, 0
      %p140 = por %p138, %p139
      %p141 = scmp.ne.s32.totalorder %s127, %s128
      %p142 = scmp.eq.s32.totalorder %s22, 5
      %p143 = por %p141, %p142
      %p145 = scmp.ne.s32.totalorder %s128, %s144
      %p146 = scmp.eq.s32.totalorder %s22, 0
      %p147 = por %p145, %p146
      %p148 = scmp.le.s32.totalorder 1, %s16
      %p149 = scmp.lt.s32.totalorder %s16, 7
      %p150 = pnand %p148, %p149
      %p151 = pneg %p150
      // Predicated region
      $region9: #{tpu_custom_call.1} parent=5 // pred_check
        _
      $region10: #{tpu_custom_call.1} parent=5 // pred_check_branch
        %153 = sbr.rel (%p150) target = $region12
      $region11: #{tpu_custom_call.1} parent=5 // pred_region
        %s154 = ssub.s32 %s16, 1
        // Predicated region
        $region13: #{tpu_custom_call.1} parent=11 // pred_check
          %p155 = pneg %p49
        $region14: #{tpu_custom_call.1} parent=11 // pred_check_branch
          %157 = sbr.rel (%p155) target = $region16
        $region15: #{tpu_custom_call.1} parent=11 // pred_region
          %s159 = ssub.s32 7168, 7168
          %160 = vsyncadd [#allocation5], %s159
          %s161 = sshll.u32 [#allocation4], 4
          %s162 = int_to_ptr.vmem [resolvable:$true] %s161
          %167 = dma.hbm_to_vmem [thread:$0]  %s1, 7168, %s162, [#allocation5], 64, 64, 4
        $region16: #{tpu_custom_call.1} parent=11 // pred_fallthru
          _
        // Predicated region
        $region17: #{tpu_custom_call.1} parent=11 // pred_check
          %p168 = pneg %p70
        $region18: #{tpu_custom_call.1} parent=11 // pred_check_branch
          %170 = sbr.rel (%p168) target = $region20
        $region19: #{tpu_custom_call.1} parent=11 // pred_region
          _
        $region20: #{tpu_custom_call.1} parent=11 // pred_fallthru
          _
        // Predicated region
        $region21: #{tpu_custom_call.1} parent=11 // pred_check
          %p171 = pneg %p91
        $region22: #{tpu_custom_call.1} parent=11 // pred_check_branch
          %173 = sbr.rel (%p171) target = $region24
        $region23: #{tpu_custom_call.1} parent=11 // pred_region
          %s175 = ssub.s32 7168, 7168
          %176 = vsyncadd [#allocation8], %s175
          %s177 = sshll.u32 [#allocation7], 4
          %s178 = int_to_ptr.vmem [resolvable:$true] %s177
          %183 = dma.hbm_to_vmem [thread:$0]  %s3, 7168, %s178, [#allocation8], 64, 64, 4
        $region24: #{tpu_custom_call.1} parent=11 // pred_fallthru
          _
        // Predicated region
        $region25: #{tpu_custom_call.1} parent=11 // pred_check
          %p184 = pneg %p112
        $region26: #{tpu_custom_call.1} parent=11 // pred_check_branch
          %186 = sbr.rel (%p184) target = $region28
        $region27: #{tpu_custom_call.1} parent=11 // pred_region
          _
        $region28: #{tpu_custom_call.1} parent=11 // pred_fallthru
          _
      $region12: #{tpu_custom_call.1} parent=5 // pred_fallthru
        _
      %p187 = scmp.lt.s32.totalorder %s16, 6
      // Predicated region
      $region29: #{tpu_custom_call.1} parent=5 // pred_check
        %p188 = pneg %p187
      $region30: #{tpu_custom_call.1} parent=5 // pred_check_branch
        %190 = sbr.rel (%p188) target = $region32
      $region31: #{tpu_custom_call.1} parent=5 // pred_region
        _
      $region32: #{tpu_custom_call.1} parent=5 // pred_fallthru
        _
      %p191 = scmp.le.s32.totalorder 1, %s16
      %p192 = scmp.lt.s32.totalorder %s16, 7
      %p193 = pnand %p191, %p192
      %p194 = pneg %p193
      // Predicated region
      $region33: #{tpu_custom_call.1} parent=5 // pred_check
        _
      $region34: #{tpu_custom_call.1} parent=5 // pred_check_branch
        %196 = sbr.rel (%p193) target = $region36
      $region35: #{tpu_custom_call.1} parent=5 // pred_region
        %s197 = ssub.s32 %s16, 1
        // Predicated region
        $region37: #{tpu_custom_call.1} parent=35 // pred_check
          %p198 = pneg %p49
        $region38: #{tpu_custom_call.1} parent=35 // pred_check_branch
          %200 = sbr.rel (%p198) target = $region40
        $region39: #{tpu_custom_call.1} parent=35 // pred_region
          %201 = dma.done [#allocation5], 7168
        $region40: #{tpu_custom_call.1} parent=35 // pred_fallthru
          _
        // Predicated region
        $region41: #{tpu_custom_call.1} parent=35 // pred_check
          %p202 = pneg %p91
        $region42: #{tpu_custom_call.1} parent=35 // pred_check_branch
          %204 = sbr.rel (%p202) target = $region44
        $region43: #{tpu_custom_call.1} parent=35 // pred_region
          %205 = dma.done [#allocation8], 7168
        $region44: #{tpu_custom_call.1} parent=35 // pred_fallthru
          _
        %p206 = pneg %p49
        %p207 = pneg %p46
        %p208 = pneg %p70
        %p209 = pneg %p67
        %p210 = pneg %p91
        %p211 = pneg %p88
        %p212 = pneg %p112
        %p213 = pneg %p109
        %p214 = pneg %p140
        %p215 = pneg %p137
        %s216 = sand.u32 %s127, 1
        %s217 = scalar_lea.sflag [#allocation6], %s216
        %s218 = sand.u32 %s127, 1
        %s219 = smul.addr %s218, 32
        %s220 = scalar_lea.vmem [#allocation9], %s219
        %s221 = smul.u32 4, %s26
        %p223 = scmp.lt.s32.totalorder %s26, 0
        %s224 = ssub.s32 0, %s26
        %s225 = scalar_select %p223, %s224, %s26
        %s226 = sand.u32 %s225, 1
        %s227 = ssub.s32 0, %s226
        %s228 = scalar_select %p223, %s227, %s226
        %p229 = scmp.ne.s32.totalorder %s228, 0
        %p230 = scmp.lt.s32.totalorder %s228, 0
        %p231 = pnand %p230, %p229
        %p232 = pneg %p231
        %s233 = sadd.s32 %s228, 2
        %s234 = scalar_select %p232, %s233, %s228
        %p235 = scmp.eq.s32.totalorder %s26, 0
        // Predicated region
        $region45: #{tpu_custom_call.1} parent=35 // pred_check
          %p236 = pneg %p235
        $region46: #{tpu_custom_call.1} parent=35 // pred_check_branch
          %238 = sbr.rel (%p236) target = $region48
        $region47: #{tpu_custom_call.1} parent=35 // pred_region
          %s239 = smul.u32 %s26, 32
          %s240 = sshra.s32 %s239, 3
          %s241 = sand.u32 %s239, 7
          %s242 = smul.u32 %s25, 14
          %s243 = sadd.s32 %s240, %s242
          %s244 = smul.addr %s243, 64
          %s245 = scalar_lea.hbm %s0, %s244
          %s246 = smul.u32 %s234, 3
          %s247 = smul.addr %s246, 8
          %s248 = scalar_lea.vmem [#allocation2], %s247
          %s249 = scalar_lea.sflag [#allocation3], %s234
          // Predicated region
          $region49: #{tpu_custom_call.1} parent=47 // pred_check
            _
          $region50: #{tpu_custom_call.1} parent=47 // pred_check_branch
            %251 = sbr.rel target = $region52
          $region51: #{tpu_custom_call.1} parent=47 // pred_region
            %252 = sst [smem:[#allocation12]] [#allocation11]
            %253 = sst [smem:[#allocation13]] [#allocation10]
          $region52: #{tpu_custom_call.1} parent=47 // pred_fallthru
            _
          %255 = shalt.err (0)
          %s257 = sshll.u32 %s248, 4
          %s258 = int_to_ptr.vmem [resolvable:$true] %s257
          %260 = dma.hbm_to_vmem [thread:$0]  %s245, 384, %s258, %s249
        $region48: #{tpu_custom_call.1} parent=35 // pred_fallthru
          _
        %s261 = sadd.s32 %s26, 1
        %p262 = scmp.lt.s32.totalorder %s261, 3
        // Predicated region
        $region53: #{tpu_custom_call.1} parent=35 // pred_check
          %p263 = pneg %p262
        $region54: #{tpu_custom_call.1} parent=35 // pred_check_branch
          %265 = sbr.rel (%p263) target = $region56
        $region55: #{tpu_custom_call.1} parent=35 // pred_region
          %s266 = ssub.s32 1, %s234
          %s267 = smul.u32 %s261, 32
          %s268 = sshra.s32 %s267, 3
          %s269 = sand.u32 %s267, 7
          %s270 = smul.u32 %s25, 14
          %s271 = sadd.s32 %s268, %s270
          %s272 = smul.addr %s271, 64
          %s273 = scalar_lea.hbm %s0, %s272
          %s274 = smul.u32 %s266, 3
          %s275 = smul.addr %s274, 8
          %s276 = scalar_lea.vmem [#allocation2], %s275
          %s277 = scalar_lea.sflag [#allocation3], %s266
          // Predicated region
          $region57: #{tpu_custom_call.1} parent=55 // pred_check
            _
          $region58: #{tpu_custom_call.1} parent=55 // pred_check_branch
            %279 = sbr.rel target = $region60
          $region59: #{tpu_custom_call.1} parent=55 // pred_region
            %280 = sst [smem:[#allocation12]] [#allocation15]
            %281 = sst [smem:[#allocation13]] [#allocation14]
          $region60: #{tpu_custom_call.1} parent=55 // pred_fallthru
            _
          %283 = shalt.err (0)
          %s285 = sshll.u32 %s276, 4
          %s286 = int_to_ptr.vmem [resolvable:$true] %s285
          %288 = dma.hbm_to_vmem [thread:$0]  %s273, 384, %s286, %s277
        $region56: #{tpu_custom_call.1} parent=35 // pred_fallthru
          _
        %s289 = smul.u32 %s26, 32
        %s290 = smul.u32 %s234, 3
        %s291 = smul.addr %s290, 8
        %s292 = scalar_lea.vmem [#allocation2], %s291
        %s293 = scalar_lea.sflag [#allocation3], %s234
        %s294 = smul.u32 4, 6
        %s295 = smul.u32 %s294, 1
        %s296 = sshll.u32 %s295, 4
        %297 = dma.done %s293, %s296
        %v298 = vld [vmem:[%s292] sm:$0xff]
        %v299 = vld [vmem:[%s292 + $0x8] sm:$0xff]
        %v300 = vld [vmem:[%s292 + $0x10] sm:$0xff]
        %vm301 = vsmask.f32 7424
        %v303 = vshrl.u32 %v298, 16
        %v305 = vshll.u32 %v298, 16
        %v307 = vrot.slane %v305, 1
        %v308 = vor.u32 %v303, %v307
        %v310 = vshll.u32 %v299, 16
        %v312 = vrot.slane %v310, 1
        %v313 = vsel %vm301, %v308, %v312
        %v314 = vshrl.u32 %v299, 16
        %v316 = vor.u32 %v314, %v312
        %v318 = vshll.u32 %v300, 16
        %v320 = vrot.slane %v318, 1
        %v321 = vsel %vm301, %v316, %v320
        %v322 = vshrl.u32 %v300, 16
        %v324 = vor.u32 %v322, %v320
        %vm328 = vcmask 1046528
        %v329 = vrot.slane %v298, 1
        %v330 = vrot.slane %v299, 1
        %v331 = vsel %vm328, %v329, %v330
        %v332 = vrot.slane %v300, 1
        %v333 = vsel %vm328, %v330, %v332
        %vm334 = vsmask.f32 6400
        %v335 = vrot.slane %v303, 1
        %v336 = vrot.slane %v305, 2
        %v337 = vor.u32 %v335, %v336
        %v338 = vrot.slane %v314, 1
        %v339 = vrot.slane %v310, 2
        %v340 = vor.u32 %v338, %v339
        %v341 = vsel %vm334, %v337, %v340
        %v342 = vrot.slane %v322, 1
        %v343 = vrot.slane %v318, 2
        %v344 = vor.u32 %v342, %v343
        %v345 = vsel %vm334, %v340, %v344
        %vm346 = vcmask 1045504
        %v347 = vrot.slane %v298, 2
        %v348 = vrot.slane %v299, 2
        %v349 = vsel %vm346, %v347, %v348
        %v350 = vrot.slane %v300, 2
        %v351 = vsel %vm346, %v348, %v350
        %vm352 = vsmask.f32 5376
        %v353 = vrot.slane %v303, 2
        %v354 = vrot.slane %v305, 3
        %v355 = vor.u32 %v353, %v354
        %v356 = vrot.slane %v314, 2
        %v357 = vrot.slane %v310, 3
        %v358 = vor.u32 %v356, %v357
        %v359 = vsel %vm352, %v355, %v358
        %v360 = vrot.slane %v322, 2
        %v361 = vrot.slane %v318, 3
        %v362 = vor.u32 %v360, %v361
        %v363 = vsel %vm352, %v358, %v362
        %vm364 = vcmask 1044480
        %v365 = vrot.slane %v298, 3
        %v366 = vrot.slane %v299, 3
        %v367 = vsel %vm364, %v365, %v366
        %v368 = vrot.slane %v300, 3
        %v369 = vsel %vm364, %v366, %v368
        %v370 = vld [vmem:[#allocation4] sm:$0xf]
        %v371 = vld [vmem:[#allocation4 + $0x4] sm:$0xf]
        %v372 = vld [vmem:[#allocation4 + $0x8] sm:$0xf]
        %v373 = vld [vmem:[#allocation4 + $0xc] sm:$0xf]
        %v374 = vld [vmem:[#allocation4 + $0x10] sm:$0xf]
        %v375 = vld [vmem:[#allocation4 + $0x14] sm:$0xf]
        %v376 = vld [vmem:[#allocation4 + $0x18] sm:$0xf]
        %v377 = vld [vmem:[#allocation4 + $0x1c] sm:$0xf]
        %v378 = vld [vmem:[#allocation4 + $0x20] sm:$0xf]
        %v379 = vld [vmem:[#allocation4 + $0x24] sm:$0xf]
        %v380 = vld [vmem:[#allocation4 + $0x28] sm:$0xf]
        %v381 = vld [vmem:[#allocation4 + $0x2c] sm:$0xf]
        %v382 = vld [vmem:[#allocation4 + $0x30] sm:$0xf]
        %v383 = vld [vmem:[#allocation4 + $0x34] sm:$0xf]
        %v384 = vld [vmem:[#allocation4 + $0x38] sm:$0xf]
        %v385 = vld [vmem:[#allocation4 + $0x3c] sm:$0xf]
        %v386 = vld [vmem:[#allocation4 + $0x40] sm:$0xf]
        %v387 = vld [vmem:[#allocation4 + $0x44] sm:$0xf]
        %v388 = vld [vmem:[#allocation4 + $0x48] sm:$0xf]
        %v389 = vld [vmem:[#allocation4 + $0x4c] sm:$0xf]
        %v390 = vld [vmem:[#allocation4 + $0x50] sm:$0xf]
        %v391 = vld [vmem:[#allocation4 + $0x54] sm:$0xf]
        %v392 = vld [vmem:[#allocation4 + $0x58] sm:$0xf]
        %v393 = vld [vmem:[#allocation4 + $0x5c] sm:$0xf]
        %v394 = vld [vmem:[#allocation4 + $0x60] sm:$0xf]
        %v395 = vld [vmem:[#allocation4 + $0x64] sm:$0xf]
        %v396 = vld [vmem:[#allocation4 + $0x68] sm:$0xf]
        %v397 = vld [vmem:[#allocation4 + $0x6c] sm:$0xf]
        %v398 = vld [vmem:[#allocation4 + $0x70] sm:$0xf]
        %v399 = vld [vmem:[#allocation4 + $0x74] sm:$0xf]
        %v400 = vld [vmem:[#allocation4 + $0x78] sm:$0xf]
        %v401 = vld [vmem:[#allocation4 + $0x7c] sm:$0xf]
        %v402 = vld [vmem:[#allocation4 + $0x80] sm:$0xf]
        %v403 = vld [vmem:[#allocation4 + $0x84] sm:$0xf]
        %v404 = vld [vmem:[#allocation4 + $0x88] sm:$0xf]
        %v405 = vld [vmem:[#allocation4 + $0x8c] sm:$0xf]
        %v406 = vld [vmem:[#allocation4 + $0x90] sm:$0xf]
        %v407 = vld [vmem:[#allocation4 + $0x94] sm:$0xf]
        %v408 = vld [vmem:[#allocation4 + $0x98] sm:$0xf]
        %v409 = vld [vmem:[#allocation4 + $0x9c] sm:$0xf]
        %v410 = vld [vmem:[#allocation4 + $0xa0] sm:$0xf]
        %v411 = vld [vmem:[#allocation4 + $0xa4] sm:$0xf]
        %v412 = vld [vmem:[#allocation4 + $0xa8] sm:$0xf]
        %v413 = vld [vmem:[#allocation4 + $0xac] sm:$0xf]
        %v414 = vld [vmem:[#allocation4 + $0xb0] sm:$0xf]
        %v415 = vld [vmem:[#allocation4 + $0xb4] sm:$0xf]
        %v416 = vld [vmem:[#allocation4 + $0xb8] sm:$0xf]
        %v417 = vld [vmem:[#allocation4 + $0xbc] sm:$0xf]
        %v418 = vld [vmem:[#allocation4 + $0xc0] sm:$0xf]
        %v419 = vld [vmem:[#allocation4 + $0xc4] sm:$0xf]
        %v420 = vld [vmem:[#allocation4 + $0xc8] sm:$0xf]
        %v421 = vld [vmem:[#allocation4 + $0xcc] sm:$0xf]
        %v422 = vld [vmem:[#allocation4 + $0xd0] sm:$0xf]
        %v423 = vld [vmem:[#allocation4 + $0xd4] sm:$0xf]
        %v424 = vld [vmem:[#allocation4 + $0xd8] sm:$0xf]
        %v425 = vld [vmem:[#allocation4 + $0xdc] sm:$0xf]
        %v426 = vld [vmem:[#allocation4 + $0xe0] sm:$0xf]
        %v427 = vld [vmem:[#allocation4 + $0xe4] sm:$0xf]
        %v428 = vld [vmem:[#allocation4 + $0xe8] sm:$0xf]
        %v429 = vld [vmem:[#allocation4 + $0xec] sm:$0xf]
        %v430 = vld [vmem:[#allocation4 + $0xf0] sm:$0xf]
        %v431 = vld [vmem:[#allocation4 + $0xf4] sm:$0xf]
        %v432 = vld [vmem:[#allocation4 + $0xf8] sm:$0xf]
        %v433 = vld [vmem:[#allocation4 + $0xfc] sm:$0xf]
        %v434 = vld [vmem:[#allocation4 + $0x100] sm:$0xf]
        %v435 = vld [vmem:[#allocation4 + $0x104] sm:$0xf]
        %v436 = vld [vmem:[#allocation4 + $0x108] sm:$0xf]
        %v437 = vld [vmem:[#allocation4 + $0x10c] sm:$0xf]
        %v438 = vld [vmem:[#allocation4 + $0x110] sm:$0xf]
        %v439 = vld [vmem:[#allocation4 + $0x114] sm:$0xf]
        %v440 = vld [vmem:[#allocation4 + $0x118] sm:$0xf]
        %v441 = vld [vmem:[#allocation4 + $0x11c] sm:$0xf]
        %v442 = vld [vmem:[#allocation4 + $0x120] sm:$0xf]
        %v443 = vld [vmem:[#allocation4 + $0x124] sm:$0xf]
        %v444 = vld [vmem:[#allocation4 + $0x128] sm:$0xf]
        %v445 = vld [vmem:[#allocation4 + $0x12c] sm:$0xf]
        %v446 = vld [vmem:[#allocation4 + $0x130] sm:$0xf]
        %v447 = vld [vmem:[#allocation4 + $0x134] sm:$0xf]
        %v448 = vld [vmem:[#allocation4 + $0x138] sm:$0xf]
        %v449 = vld [vmem:[#allocation4 + $0x13c] sm:$0xf]
        %v450 = vld [vmem:[#allocation4 + $0x140] sm:$0xf]
        %v451 = vld [vmem:[#allocation4 + $0x144] sm:$0xf]
        %v452 = vld [vmem:[#allocation4 + $0x148] sm:$0xf]
        %v453 = vld [vmem:[#allocation4 + $0x14c] sm:$0xf]
        %v454 = vld [vmem:[#allocation4 + $0x150] sm:$0xf]
        %v455 = vld [vmem:[#allocation4 + $0x154] sm:$0xf]
        %v456 = vld [vmem:[#allocation4 + $0x158] sm:$0xf]
        %v457 = vld [vmem:[#allocation4 + $0x15c] sm:$0xf]
        %v458 = vld [vmem:[#allocation4 + $0x160] sm:$0xf]
        %v459 = vld [vmem:[#allocation4 + $0x164] sm:$0xf]
        %v460 = vld [vmem:[#allocation4 + $0x168] sm:$0xf]
        %v461 = vld [vmem:[#allocation4 + $0x16c] sm:$0xf]
        %v462 = vld [vmem:[#allocation4 + $0x170] sm:$0xf]
        %v463 = vld [vmem:[#allocation4 + $0x174] sm:$0xf]
        %v464 = vld [vmem:[#allocation4 + $0x178] sm:$0xf]
        %v465 = vld [vmem:[#allocation4 + $0x17c] sm:$0xf]
        %v466 = vld [vmem:[#allocation4 + $0x180] sm:$0xf]
        %v467 = vld [vmem:[#allocation4 + $0x184] sm:$0xf]
        %v468 = vld [vmem:[#allocation4 + $0x188] sm:$0xf]
        %v469 = vld [vmem:[#allocation4 + $0x18c] sm:$0xf]
        %v470 = vld [vmem:[#allocation4 + $0x190] sm:$0xf]
        %v471 = vld [vmem:[#allocation4 + $0x194] sm:$0xf]
        %v472 = vld [vmem:[#allocation4 + $0x198] sm:$0xf]
        %v473 = vld [vmem:[#allocation4 + $0x19c] sm:$0xf]
        %v474 = vld [vmem:[#allocation4 + $0x1a0] sm:$0xf]
        %v475 = vld [vmem:[#allocation4 + $0x1a4] sm:$0xf]
        %v476 = vld [vmem:[#allocation4 + $0x1a8] sm:$0xf]
        %v477 = vld [vmem:[#allocation4 + $0x1ac] sm:$0xf]
        %v478 = vld [vmem:[#allocation4 + $0x1b0] sm:$0xf]
        %v479 = vld [vmem:[#allocation4 + $0x1b4] sm:$0xf]
        %v480 = vld [vmem:[#allocation4 + $0x1b8] sm:$0xf]
        %v481 = vld [vmem:[#allocation4 + $0x1bc] sm:$0xf]
        %v482 = vld [vmem:[%s2] sm:$0x1]
        %v484 = vlaneseq
        %v485 = vshrl.u32 %v484, 7
        %v486 = vsub.s32 0, %v485
        %v487 = vrot.slane %v482, %v486
        %v489 = vrot.slane %v313, 1
        %v490 = vrot.slane %v321, 1
        %v491 = vsel %vm328, %v489, %v490
        %v492 = vrot.slane %v331, 1
        %v493 = vrot.slane %v333, 1
        %v494 = vsel %vm328, %v492, %v493
        %v495 = vrot.slane %v341, 1
        %v496 = vrot.slane %v345, 1
        %v497 = vsel %vm328, %v495, %v496
        %v498 = vrot.slane %v349, 1
        %v499 = vrot.slane %v351, 1
        %v500 = vsel %vm328, %v498, %v499
        %v501 = vrot.slane %v359, 1
        %v502 = vrot.slane %v363, 1
        %v503 = vsel %vm328, %v501, %v502
        %v504 = vrot.slane %v367, 1
        %v505 = vrot.slane %v369, 1
        %v506 = vsel %vm328, %v504, %v505
        %v507 = vrot.slane %v324, 1
        %v508 = vsel %vm328, %v490, %v507
        %v509 = vrot.slane %v332, 1
        %v510 = vsel %vm328, %v493, %v509
        %v511 = vrot.slane %v344, 1
        %v512 = vsel %vm328, %v496, %v511
        %v513 = vrot.slane %v350, 1
        %v514 = vsel %vm328, %v499, %v513
        %v515 = vrot.slane %v362, 1
        %v516 = vsel %vm328, %v502, %v515
        %v517 = vrot.slane %v368, 1
        %v518 = vsel %vm328, %v505, %v517
        %v652 = vunpack.c.l.b16 %v370
        %v653 = vunpack.c.l.b16 %v371
        %v654 = vunpack.c.l.b16 %v372
        %v655 = vunpack.c.l.b16 %v373
        %v656 = vunpack.c.l.b16 %v374
        %v657 = vunpack.c.l.b16 %v375
        %v658 = vunpack.c.l.b16 %v376
        %v659 = vunpack.c.l.b16 %v377
        %v660 = vunpack.c.l.b16 %v378
        %v661 = vunpack.c.l.b16 %v379
        %v662 = vunpack.c.l.b16 %v380
        %v663 = vunpack.c.l.b16 %v381
        %v664 = vunpack.c.l.b16 %v382
        %v665 = vunpack.c.l.b16 %v383
        %v666 = vunpack.c.l.b16 %v384
        %v667 = vunpack.c.l.b16 %v385
        %v668 = vunpack.c.l.b16 %v386
        %v669 = vunpack.c.l.b16 %v387
        %v670 = vunpack.c.l.b16 %v388
        %v671 = vunpack.c.l.b16 %v389
        %v672 = vunpack.c.l.b16 %v390
        %v673 = vunpack.c.l.b16 %v391
        %v674 = vunpack.c.l.b16 %v392
        %v675 = vunpack.c.l.b16 %v393
        %v676 = vunpack.c.l.b16 %v394
        %v677 = vunpack.c.l.b16 %v395
        %v678 = vunpack.c.l.b16 %v396
        %v679 = vunpack.c.l.b16 %v397
        %v680 = vunpack.c.l.b16 %v398
        %v681 = vunpack.c.l.b16 %v399
        %v682 = vunpack.c.l.b16 %v400
        %v683 = vunpack.c.l.b16 %v401
        %v684 = vunpack.c.l.b16 %v402
        %v685 = vunpack.c.l.b16 %v403
        %v686 = vunpack.c.l.b16 %v404
        %v687 = vunpack.c.l.b16 %v405
        %v688 = vunpack.c.l.b16 %v406
        %v689 = vunpack.c.l.b16 %v407
        %v690 = vunpack.c.l.b16 %v408
        %v691 = vunpack.c.l.b16 %v409
        %v692 = vunpack.c.l.b16 %v410
        %v693 = vunpack.c.l.b16 %v411
        %v694 = vunpack.c.l.b16 %v412
        %v695 = vunpack.c.l.b16 %v413
        %v696 = vunpack.c.l.b16 %v414
        %v697 = vunpack.c.l.b16 %v415
        %v698 = vunpack.c.l.b16 %v416
        %v699 = vunpack.c.l.b16 %v417
        %v700 = vunpack.c.l.b16 %v418
        %v701 = vunpack.c.l.b16 %v419
        %v702 = vunpack.c.l.b16 %v420
        %v703 = vunpack.c.l.b16 %v421
        %v704 = vunpack.c.l.b16 %v422
        %v705 = vunpack.c.l.b16 %v423
        %v706 = vunpack.c.l.b16 %v424
        %v707 = vunpack.c.l.b16 %v425
        %v708 = vunpack.c.l.b16 %v426
        %v709 = vunpack.c.l.b16 %v427
        %v710 = vunpack.c.l.b16 %v428
        %v711 = vunpack.c.l.b16 %v429
        %v712 = vunpack.c.l.b16 %v430
        %v713 = vunpack.c.l.b16 %v431
        %v714 = vunpack.c.l.b16 %v432
        %v715 = vunpack.c.l.b16 %v433
        %v716 = vunpack.c.l.b16 %v434
        %v717 = vunpack.c.l.b16 %v435
        %v718 = vunpack.c.l.b16 %v436
        %v719 = vunpack.c.l.b16 %v437
        %v720 = vunpack.c.l.b16 %v438
        %v721 = vunpack.c.l.b16 %v439
        %v722 = vunpack.c.l.b16 %v440
        %v723 = vunpack.c.l.b16 %v441
        %v724 = vunpack.c.l.b16 %v442
        %v725 = vunpack.c.l.b16 %v443
        %v726 = vunpack.c.l.b16 %v444
        %v727 = vunpack.c.l.b16 %v445
        %v728 = vunpack.c.l.b16 %v446
        %v729 = vunpack.c.l.b16 %v447
        %v730 = vunpack.c.l.b16 %v448
        %v731 = vunpack.c.l.b16 %v449
        %v732 = vunpack.c.l.b16 %v450
        %v733 = vunpack.c.l.b16 %v451
        %v734 = vunpack.c.l.b16 %v452
        %v735 = vunpack.c.l.b16 %v453
        %v736 = vunpack.c.l.b16 %v454
        %v737 = vunpack.c.l.b16 %v455
        %v738 = vunpack.c.l.b16 %v456
        %v739 = vunpack.c.l.b16 %v457
        %v740 = vunpack.c.l.b16 %v458
        %v741 = vunpack.c.l.b16 %v459
        %v742 = vunpack.c.l.b16 %v460
        %v743 = vunpack.c.l.b16 %v461
        %v744 = vunpack.c.l.b16 %v462
        %v745 = vunpack.c.l.b16 %v463
        %v746 = vunpack.c.l.b16 %v464
        %v747 = vunpack.c.l.b16 %v465
        %v748 = vunpack.c.l.b16 %v466
        %v749 = vunpack.c.l.b16 %v467
        %v750 = vunpack.c.l.b16 %v468
        %v751 = vunpack.c.l.b16 %v469
        %v752 = vunpack.c.l.b16 %v470
        %v753 = vunpack.c.l.b16 %v471
        %v754 = vunpack.c.l.b16 %v472
        %v755 = vunpack.c.l.b16 %v473
        %v756 = vunpack.c.l.b16 %v474
        %v757 = vunpack.c.l.b16 %v475
        %v758 = vunpack.c.l.b16 %v476
        %v759 = vunpack.c.l.b16 %v477
        %v760 = vunpack.c.l.b16 %v478
        %v761 = vunpack.c.l.b16 %v479
        %v762 = vunpack.c.l.b16 %v480
        %v763 = vunpack.c.l.b16 %v481
        %v764 = vpack.c.b16 %v653, %v652
        %v765 = vpack.c.b16 %v655, %v654
        %v766 = vpack.c.b16 %v657, %v656
        %v767 = vpack.c.b16 %v659, %v658
        %v768 = vpack.c.b16 %v661, %v660
        %v769 = vpack.c.b16 %v663, %v662
        %v770 = vpack.c.b16 %v665, %v664
        %v771 = vpack.c.b16 %v667, %v666
        %v772 = vpack.c.b16 %v669, %v668
        %v773 = vpack.c.b16 %v671, %v670
        %v774 = vpack.c.b16 %v673, %v672
        %v775 = vpack.c.b16 %v675, %v674
        %v776 = vpack.c.b16 %v677, %v676
        %v777 = vpack.c.b16 %v679, %v678
        %v778 = vpack.c.b16 %v681, %v680
        %v779 = vpack.c.b16 %v683, %v682
        %v780 = vpack.c.b16 %v685, %v684
        %v781 = vpack.c.b16 %v687, %v686
        %v782 = vpack.c.b16 %v689, %v688
        %v783 = vpack.c.b16 %v691, %v690
        %v784 = vpack.c.b16 %v693, %v692
        %v785 = vpack.c.b16 %v695, %v694
        %v786 = vpack.c.b16 %v697, %v696
        %v787 = vpack.c.b16 %v699, %v698
        %v788 = vpack.c.b16 %v701, %v700
        %v789 = vpack.c.b16 %v703, %v702
        %v790 = vpack.c.b16 %v705, %v704
        %v791 = vpack.c.b16 %v707, %v706
        %v792 = vpack.c.b16 %v709, %v708
        %v793 = vpack.c.b16 %v711, %v710
        %v794 = vpack.c.b16 %v713, %v712
        %v795 = vpack.c.b16 %v715, %v714
        %v796 = vpack.c.b16 %v717, %v716
        %v797 = vpack.c.b16 %v719, %v718
        %v798 = vpack.c.b16 %v721, %v720
        %v799 = vpack.c.b16 %v723, %v722
        %v800 = vpack.c.b16 %v725, %v724
        %v801 = vpack.c.b16 %v727, %v726
        %v802 = vpack.c.b16 %v729, %v728
        %v803 = vpack.c.b16 %v731, %v730
        %v804 = vpack.c.b16 %v733, %v732
        %v805 = vpack.c.b16 %v735, %v734
        %v806 = vpack.c.b16 %v737, %v736
        %v807 = vpack.c.b16 %v739, %v738
        %v808 = vpack.c.b16 %v741, %v740
        %v809 = vpack.c.b16 %v743, %v742
        %v810 = vpack.c.b16 %v745, %v744
        %v811 = vpack.c.b16 %v747, %v746
        %v812 = vpack.c.b16 %v749, %v748
        %v813 = vpack.c.b16 %v751, %v750
        %v814 = vpack.c.b16 %v753, %v752
        %v815 = vpack.c.b16 %v755, %v754
        %v816 = vpack.c.b16 %v757, %v756
        %v817 = vpack.c.b16 %v759, %v758
        %v818 = vpack.c.b16 %v761, %v760
        %v819 = vpack.c.b16 %v763, %v762
        %876 = vmatprep.subr.bf16.mxu0 0
        %877 = vmatpush1.bf16.msra.mxu0 %v764
        %878 = vmatprep.subr.bf16.mxu0 0
        %879 = vmatpush1.bf16.msra.mxu0 %v765
        %880 = vmatprep.subr.bf16.mxu0 0
        %881 = vmatpush1.bf16.msra.mxu0 %v766
        %882 = vmatprep.subr.bf16.mxu0 0
        %883 = vmatpush1.bf16.msra.mxu0 %v767
        %884 = vmatprep.subr.bf16.mxu0 0
        %885 = vmatpush1.bf16.msra.mxu0 %v768
        %886 = vmatprep.subr.bf16.mxu0 0
        %887 = vmatpush1.bf16.msra.mxu0 %v769
        %888 = vmatprep.subr.bf16.mxu0 0
        %889 = vmatpush1.bf16.msra.mxu0 %v770
        %890 = vmatprep.subr.bf16.mxu0 0
        %891 = vmatpush1.bf16.msra.mxu0 %v771
        %892 = vmatprep.subr.bf16.mxu0 0
        %893 = vmatpush1.bf16.msra.mxu0 %v772
        %894 = vmatprep.subr.bf16.mxu0 0
        %895 = vmatpush1.bf16.msra.mxu0 %v773
        %896 = vmatprep.subr.bf16.mxu0 0
        %897 = vmatpush1.bf16.msra.mxu0 %v774
        %898 = vmatprep.subr.bf16.mxu0 0
        %899 = vmatpush1.bf16.msra.mxu0 %v775
        %900 = vmatprep.subr.bf16.mxu0 0
        %901 = vmatpush1.bf16.msra.mxu0 %v776
        %902 = vmatprep.subr.bf16.mxu0 0
        %903 = vmatpush1.bf16.msra.mxu0 %v777
        %904 = vmatprep.subr.bf16.mxu0 0
        %905 = vmatpush1.bf16.msra.mxu0 %v778
        %906 = vmatprep.subr.bf16.mxu0 0
        %907 = vmatpush1.bf16.msra.mxu0 %v779
        %908 = vmatprep.mubr.bf16.mxu0 %v491
        %909 = vmatmul.mubr.bf16.gmra.mrb[0].mxu0 %v331
        %v910 = vpop.f32.mrb[0].mxu0
        %v911 = vadd.f32 %v487, %v910
        %v912 = vpop.f32.mrb[0].mxu0
        %v913 = vpop.f32.mrb[0].mxu0
        %v914 = vadd.f32 %v487, %v913
        %v915 = vpop.f32.mrb[0].mxu0
        %916 = vmatprep.mubr.bf16.mxu0 %v508
        %917 = vmatmul.mubr.bf16.gmra.mrb[0].mxu0 %v333
        %v918 = vpop.f32.mrb[0].mxu0
        %v919 = vadd.f32 %v487, %v918
        %v920 = vpop.f32.mrb[0].mxu0
        %v921 = vpop.f32.mrb[0].mxu0
        %v922 = vadd.f32 %v487, %v921
        %v923 = vpop.f32.mrb[0].mxu0
        %924 = vmatprep.mubr.bf16.mxu0 %v507
        %925 = vmatmul.mubr.bf16.gmra.mrb[0].mxu0 %v332
        %v926 = vpop.f32.mrb[0].mxu0
        %v927 = vadd.f32 %v487, %v926
        %v928 = vpop.f32.mrb[0].mxu0
        %v929 = vpop.f32.mrb[0].mxu0
        %v930 = vpop.f32.mrb[0].mxu0
        %931 = vdwg.mxu0
        %932 = vmatprep.subr.bf16.mxu0 0
        %933 = vmatpush1.bf16.msra.mxu0 %v780
        %934 = vmatprep.subr.bf16.mxu0 0
        %935 = vmatpush1.bf16.msra.mxu0 %v781
        %936 = vmatprep.subr.bf16.mxu0 0
        %937 = vmatpush1.bf16.msra.mxu0 %v782
        %938 = vmatprep.subr.bf16.mxu0 0
        %939 = vmatpush1.bf16.msra.mxu0 %v783
        %940 = vmatprep.subr.bf16.mxu0 0
        %941 = vmatpush1.bf16.msra.mxu0 %v784
        %942 = vmatprep.subr.bf16.mxu0 0
        %943 = vmatpush1.bf16.msra.mxu0 %v785
        %944 = vmatprep.subr.bf16.mxu0 0
        %945 = vmatpush1.bf16.msra.mxu0 %v786
        %946 = vmatprep.subr.bf16.mxu0 0
        %947 = vmatpush1.bf16.msra.mxu0 %v787
        %948 = vmatprep.subr.bf16.mxu0 0
        %949 = vmatpush1.bf16.msra.mxu0 %v788
        %950 = vmatprep.subr.bf16.mxu0 0
        %951 = vmatpush1.bf16.msra.mxu0 %v789
        %952 = vmatprep.subr.bf16.mxu0 0
        %953 = vmatpush1.bf16.msra.mxu0 %v790
        %954 = vmatprep.subr.bf16.mxu0 0
        %955 = vmatpush1.bf16.msra.mxu0 %v791
        %956 = vmatprep.subr.bf16.mxu0 0
        %957 = vmatpush1.bf16.msra.mxu0 %v792
        %958 = vmatprep.subr.bf16.mxu0 0
        %959 = vmatpush1.bf16.msra.mxu0 %v793
        %960 = vmatprep.subr.bf16.mxu0 0
        %961 = vmatpush1.bf16.msra.mxu0 %v794
        %962 = vmatprep.subr.bf16.mxu0 0
        %963 = vmatpush1.bf16.msra.mxu0 %v795
        %964 = vmatprep.mubr.bf16.mxu0 %v497
        %965 = vmatmul.mubr.bf16.gmra.mrb[0].mxu0 %v494
        %v966 = vpop.f32.mrb[0].mxu0
        %v967 = vadd.f32 %v911, %v966
        %v968 = vpop.f32.mrb[0].mxu0
        %v969 = vpop.f32.mrb[0].mxu0
        %v970 = vadd.f32 %v914, %v969
        %v971 = vpop.f32.mrb[0].mxu0
        %972 = vmatprep.mubr.bf16.mxu0 %v512
        %973 = vmatmul.mubr.bf16.gmra.mrb[0].mxu0 %v510
        %v974 = vpop.f32.mrb[0].mxu0
        %v975 = vadd.f32 %v919, %v974
        %v976 = vpop.f32.mrb[0].mxu0
        %v977 = vpop.f32.mrb[0].mxu0
        %v978 = vadd.f32 %v922, %v977
        %v979 = vpop.f32.mrb[0].mxu0
        %980 = vmatprep.mubr.bf16.mxu0 %v511
        %981 = vmatmul.mubr.bf16.gmra.mrb[0].mxu0 %v509
        %v982 = vpop.f32.mrb[0].mxu0
        %v983 = vadd.f32 %v927, %v982
        %v984 = vpop.f32.mrb[0].mxu0
        %v985 = vpop.f32.mrb[0].mxu0
        %v986 = vpop.f32.mrb[0].mxu0
        %987 = vdwg.mxu0
        %988 = vmatprep.subr.bf16.mxu0 0
        %989 = vmatpush1.bf16.msra.mxu0 %v796
        %990 = vmatprep.subr.bf16.mxu0 0
        %991 = vmatpush1.bf16.msra.mxu0 %v797
        %992 = vmatprep.subr.bf16.mxu0 0
        %993 = vmatpush1.bf16.msra.mxu0 %v798
        %994 = vmatprep.subr.bf16.mxu0 0
        %995 = vmatpush1.bf16.msra.mxu0 %v799
        %996 = vmatprep.subr.bf16.mxu0 0
        %997 = vmatpush1.bf16.msra.mxu0 %v800
        %998 = vmatprep.subr.bf16.mxu0 0
        %999 = vmatpush1.bf16.msra.mxu0 %v801
        %1000 = vmatprep.subr.bf16.mxu0 0
        %1001 = vmatpush1.bf16.msra.mxu0 %v802
        %1002 = vmatprep.subr.bf16.mxu0 0
        %1003 = vmatpush1.bf16.msra.mxu0 %v803
        %1004 = vmatprep.subr.bf16.mxu0 0
        %1005 = vmatpush1.bf16.msra.mxu0 %v804
        %1006 = vmatprep.subr.bf16.mxu0 0
        %1007 = vmatpush1.bf16.msra.mxu0 %v805
        %1008 = vmatprep.subr.bf16.mxu0 0
        %1009 = vmatpush1.bf16.msra.mxu0 %v806
        %1010 = vmatprep.subr.bf16.mxu0 0
        %1011 = vmatpush1.bf16.msra.mxu0 %v807
        %1012 = vmatprep.subr.bf16.mxu0 0
        %1013 = vmatpush1.bf16.msra.mxu0 %v808
        %1014 = vmatprep.subr.bf16.mxu0 0
        %1015 = vmatpush1.bf16.msra.mxu0 %v809
        %1016 = vmatprep.subr.bf16.mxu0 0
        %1017 = vmatpush1.bf16.msra.mxu0 %v810
        %1018 = vmatprep.subr.bf16.mxu0 0
        %1019 = vmatpush1.bf16.msra.mxu0 %v811
        %1020 = vmatprep.mubr.bf16.mxu0 %v503
        %1021 = vmatmul.mubr.bf16.gmra.mrb[0].mxu0 %v500
        %v1022 = vpop.f32.mrb[0].mxu0
        %v1023 = vadd.f32 %v967, %v1022
        %v1024 = vpop.f32.mrb[0].mxu0
        %v1025 = vpop.f32.mrb[0].mxu0
        %v1026 = vadd.f32 %v970, %v1025
        %v1027 = vpop.f32.mrb[0].mxu0
        %1028 = vmatprep.mubr.bf16.mxu0 %v516
        %1029 = vmatmul.mubr.bf16.gmra.mrb[0].mxu0 %v514
        %v1030 = vpop.f32.mrb[0].mxu0
        %v1031 = vadd.f32 %v975, %v1030
        %v1032 = vpop.f32.mrb[0].mxu0
        %v1033 = vpop.f32.mrb[0].mxu0
        %v1034 = vadd.f32 %v978, %v1033
        %v1035 = vpop.f32.mrb[0].mxu0
        %1036 = vmatprep.mubr.bf16.mxu0 %v515
        %1037 = vmatmul.mubr.bf16.gmra.mrb[0].mxu0 %v513
        %v1038 = vpop.f32.mrb[0].mxu0
        %v1039 = vadd.f32 %v983, %v1038
        %v1040 = vpop.f32.mrb[0].mxu0
        %v1041 = vpop.f32.mrb[0].mxu0
        %v1042 = vpop.f32.mrb[0].mxu0
        %1043 = vdwg.mxu0
        %1044 = vmatprep.subr.bf16.mxu0 0
        %1045 = vmatpush1.bf16.msra.mxu0 %v812
        %1046 = vmatprep.subr.bf16.mxu0 0
        %1047 = vmatpush1.bf16.msra.mxu0 %v813
        %1048 = vmatprep.subr.bf16.mxu0 0
        %1049 = vmatpush1.bf16.msra.mxu0 %v814
        %1050 = vmatprep.subr.bf16.mxu0 0
        %1051 = vmatpush1.bf16.msra.mxu0 %v815
        %1052 = vmatprep.subr.bf16.mxu0 0
        %1053 = vmatpush1.bf16.msra.mxu0 %v816
        %1054 = vmatprep.subr.bf16.mxu0 0
        %1055 = vmatpush1.bf16.msra.mxu0 %v817
        %1056 = vmatprep.subr.bf16.mxu0 0
        %1057 = vmatpush1.bf16.msra.mxu0 %v818
        %1058 = vmatprep.subr.bf16.mxu0 0
        %1059 = vmatpush1.bf16.msra.mxu0 %v819
        %1060 = vmatprep.subr.bf16.mxu0 0
        %1061 = vmatpush1.bf16.msra.mxu0 0
        %1062 = vmatprep.subr.bf16.mxu0 0
        %1063 = vmatpush1.bf16.msra.mxu0 0
        %1064 = vmatprep.subr.bf16.mxu0 0
        %1065 = vmatpush1.bf16.msra.mxu0 0
        %1066 = vmatprep.subr.bf16.mxu0 0
        %1067 = vmatpush1.bf16.msra.mxu0 0
        %1068 = vmatprep.subr.bf16.mxu0 0
        %1069 = vmatpush1.bf16.msra.mxu0 0
        %1070 = vmatprep.subr.bf16.mxu0 0
        %1071 = vmatpush1.bf16.msra.mxu0 0
        %1072 = vmatprep.subr.bf16.mxu0 0
        %1073 = vmatpush1.bf16.msra.mxu0 0
        %1074 = vmatprep.subr.bf16.mxu0 0
        %1075 = vmatpush1.bf16.msra.mxu0 0
        %1076 = vmatprep.mubr.bf16.mxu0 0
        %1077 = vmatmul.mubr.bf16.gmra.mrb[0].mxu0 %v506
        %v1078 = vpop.f32.mrb[0].mxu0
        %v1079 = vadd.f32 %v1023, %v1078
        %v1080 = vpop.f32.mrb[0].mxu0
        %v1081 = vpop.f32.mrb[0].mxu0
        %v1082 = vadd.f32 %v1026, %v1081
        %v1083 = vpop.f32.mrb[0].mxu0
        %1084 = vmatprep.mubr.bf16.mxu0 0
        %1085 = vmatmul.mubr.bf16.gmra.mrb[0].mxu0 %v518
        %v1086 = vpop.f32.mrb[0].mxu0
        %v1087 = vadd.f32 %v1031, %v1086
        %v1088 = vpop.f32.mrb[0].mxu0
        %v1089 = vpop.f32.mrb[0].mxu0
        %v1090 = vadd.f32 %v1034, %v1089
        %v1091 = vpop.f32.mrb[0].mxu0
        %1092 = vmatprep.mubr.bf16.mxu0 0
        %1093 = vmatmul.mubr.bf16.gmra.mrb[0].mxu0 %v517
        %v1094 = vpop.f32.mrb[0].mxu0
        %v1095 = vadd.f32 %v1039, %v1094
        %v1096 = vpop.f32.mrb[0].mxu0
        %v1097 = vpop.f32.mrb[0].mxu0
        %v1098 = vpop.f32.mrb[0].mxu0
        %1099 = vdwg.mxu0
        %v1100 = vmax.f32 %v1079, 0.0
        %v1101 = vmax.f32 %v1082, 0.0
        %v1102 = vmax.f32 %v1087, 0.0
        %v1103 = vmax.f32 %v1090, 0.0
        %v1104 = vmax.f32 %v1095, 0.0
        %s1105 = ssub.s32 %s289, 3
        %v1106 = vlaneseq
        %v1107 = vshrl.u32 %v1106, 7
        %v1108 = vadd.s32 %v1107, 8
        %v1109 = vadd.s32 %v1107, 16
        %v1110 = vadd.s32 %v1107, 24
        %v1111 = vadd.s32 %v1107, 32
        %v1112 = vstv %s1105
        %v1113 = vadd.s32 %v1112, %v1107
        %v1114 = vadd.s32 %v1112, %v1108
        %v1115 = vadd.s32 %v1112, %v1109
        %v1116 = vadd.s32 %v1112, %v1110
        %v1117 = vadd.s32 %v1112, %v1111
        %vm1118 = vcmp.ge.s32.totalorder %v1113, 0
        %vm1119 = vcmp.ge.s32.totalorder %v1114, 0
        %vm1120 = vcmp.ge.s32.totalorder %v1115, 0
        %vm1121 = vcmp.ge.s32.totalorder %v1116, 0
        %vm1122 = vcmp.ge.s32.totalorder %v1117, 0
        %vm1123 = vcmp.lt.s32.totalorder %v1113, 96
        %vm1124 = vcmp.lt.s32.totalorder %v1114, 96
        %vm1125 = vcmp.lt.s32.totalorder %v1115, 96
        %vm1126 = vcmp.lt.s32.totalorder %v1116, 96
        %vm1127 = vcmp.lt.s32.totalorder %v1117, 96
        %vm1128 = vmand %vm1118, %vm1123
        %vm1129 = vmand %vm1119, %vm1124
        %vm1130 = vmand %vm1120, %vm1125
        %vm1131 = vmand %vm1121, %vm1126
        %vm1132 = vmand %vm1122, %vm1127
        %v1133 = vsel %vm1128, 1, 0
        %v1134 = vsel %vm1129, 1, 0
        %v1135 = vsel %vm1130, 1, 0
        %v1136 = vsel %vm1131, 1, 0
        %v1137 = vsel %vm1132, 1, 0
        %vm1138 = vcmp.eq.s32.totalorder %v1133, 1
        %vm1139 = vcmp.eq.s32.totalorder %v1134, 1
        %vm1140 = vcmp.eq.s32.totalorder %v1135, 1
        %vm1141 = vcmp.eq.s32.totalorder %v1136, 1
        %vm1142 = vcmp.eq.s32.totalorder %v1137, 1
        %v1143 = vsel %vm1138, %v1100, 0.0
        %v1144 = vsel %vm1139, %v1101, 0.0
        %v1145 = vsel %vm1140, %v1102, 0.0
        %v1146 = vsel %vm1141, %v1103, 0.0
        %v1147 = vsel %vm1142, %v1104, 0.0
        %v1148 = vpack.c.bf16 %v1144, %v1143
        %v1149 = vpack.c.bf16 %v1146, %v1145
        %v1150 = vpack.c.bf16 %v1147, %v1147
        %v1152 = vshrl.u32 %v1148, 16
        %v1154 = vshll.u32 %v1148, 16
        %v1156 = vrot.slane %v1154, 1
        %v1157 = vor.u32 %v1152, %v1156
        %v1159 = vshll.u32 %v1149, 16
        %v1161 = vrot.slane %v1159, 1
        %v1162 = vsel %vm301, %v1157, %v1161
        %v1163 = vshrl.u32 %v1149, 16
        %v1165 = vor.u32 %v1163, %v1161
        %v1167 = vshll.u32 %v1150, 16
        %v1169 = vrot.slane %v1167, 1
        %v1170 = vsel %vm301, %v1165, %v1169
        %v1176 = vrot.slane %v1148, 1
        %v1177 = vrot.slane %v1149, 1
        %v1178 = vsel %vm328, %v1176, %v1177
        %v1179 = vrot.slane %v1150, 1
        %v1180 = vsel %vm328, %v1177, %v1179
        %v1183 = vrot.slane %v1152, 1
        %v1184 = vrot.slane %v1154, 2
        %v1185 = vor.u32 %v1183, %v1184
        %v1186 = vrot.slane %v1163, 1
        %v1187 = vrot.slane %v1159, 2
        %v1188 = vor.u32 %v1186, %v1187
        %v1189 = vsel %vm334, %v1185, %v1188
        %v1190 = vshrl.u32 %v1150, 16
        %v1192 = vrot.slane %v1190, 1
        %v1193 = vrot.slane %v1167, 2
        %v1194 = vor.u32 %v1192, %v1193
        %v1195 = vsel %vm334, %v1188, %v1194
        %v1198 = vrot.slane %v1148, 2
        %v1199 = vrot.slane %v1149, 2
        %v1200 = vsel %vm346, %v1198, %v1199
        %v1201 = vrot.slane %v1150, 2
        %v1202 = vsel %vm346, %v1199, %v1201
        %v1205 = vrot.slane %v1152, 2
        %v1206 = vrot.slane %v1154, 3
        %v1207 = vor.u32 %v1205, %v1206
        %v1208 = vrot.slane %v1163, 2
        %v1209 = vrot.slane %v1159, 3
        %v1210 = vor.u32 %v1208, %v1209
        %v1211 = vsel %vm352, %v1207, %v1210
        %v1212 = vrot.slane %v1190, 2
        %v1213 = vrot.slane %v1167, 3
        %v1214 = vor.u32 %v1212, %v1213
        %v1215 = vsel %vm352, %v1210, %v1214
        %v1218 = vrot.slane %v1148, 3
        %v1219 = vrot.slane %v1149, 3
        %v1220 = vsel %vm364, %v1218, %v1219
        %v1221 = vrot.slane %v1150, 3
        %v1222 = vsel %vm364, %v1219, %v1221
        %v1225 = vld [vmem:[#allocation7] sm:$0xf]
        %v1226 = vld [vmem:[#allocation7 + $0x4] sm:$0xf]
        %v1227 = vld [vmem:[#allocation7 + $0x8] sm:$0xf]
        %v1228 = vld [vmem:[#allocation7 + $0xc] sm:$0xf]
        %v1229 = vld [vmem:[#allocation7 + $0x10] sm:$0xf]
        %v1230 = vld [vmem:[#allocation7 + $0x14] sm:$0xf]
        %v1231 = vld [vmem:[#allocation7 + $0x18] sm:$0xf]
        %v1232 = vld [vmem:[#allocation7 + $0x1c] sm:$0xf]
        %v1233 = vld [vmem:[#allocation7 + $0x20] sm:$0xf]
        %v1234 = vld [vmem:[#allocation7 + $0x24] sm:$0xf]
        %v1235 = vld [vmem:[#allocation7 + $0x28] sm:$0xf]
        %v1236 = vld [vmem:[#allocation7 + $0x2c] sm:$0xf]
        %v1237 = vld [vmem:[#allocation7 + $0x30] sm:$0xf]
        %v1238 = vld [vmem:[#allocation7 + $0x34] sm:$0xf]
        %v1239 = vld [vmem:[#allocation7 + $0x38] sm:$0xf]
        %v1240 = vld [vmem:[#allocation7 + $0x3c] sm:$0xf]
        %v1241 = vld [vmem:[#allocation7 + $0x40] sm:$0xf]
        %v1242 = vld [vmem:[#allocation7 + $0x44] sm:$0xf]
        %v1243 = vld [vmem:[#allocation7 + $0x48] sm:$0xf]
        %v1244 = vld [vmem:[#allocation7 + $0x4c] sm:$0xf]
        %v1245 = vld [vmem:[#allocation7 + $0x50] sm:$0xf]
        %v1246 = vld [vmem:[#allocation7 + $0x54] sm:$0xf]
        %v1247 = vld [vmem:[#allocation7 + $0x58] sm:$0xf]
        %v1248 = vld [vmem:[#allocation7 + $0x5c] sm:$0xf]
        %v1249 = vld [vmem:[#allocation7 + $0x60] sm:$0xf]
        %v1250 = vld [vmem:[#allocation7 + $0x64] sm:$0xf]
        %v1251 = vld [vmem:[#allocation7 + $0x68] sm:$0xf]
        %v1252 = vld [vmem:[#allocation7 + $0x6c] sm:$0xf]
        %v1253 = vld [vmem:[#allocation7 + $0x70] sm:$0xf]
        %v1254 = vld [vmem:[#allocation7 + $0x74] sm:$0xf]
        %v1255 = vld [vmem:[#allocation7 + $0x78] sm:$0xf]
        %v1256 = vld [vmem:[#allocation7 + $0x7c] sm:$0xf]
        %v1257 = vld [vmem:[#allocation7 + $0x80] sm:$0xf]
        %v1258 = vld [vmem:[#allocation7 + $0x84] sm:$0xf]
        %v1259 = vld [vmem:[#allocation7 + $0x88] sm:$0xf]
        %v1260 = vld [vmem:[#allocation7 + $0x8c] sm:$0xf]
        %v1261 = vld [vmem:[#allocation7 + $0x90] sm:$0xf]
        %v1262 = vld [vmem:[#allocation7 + $0x94] sm:$0xf]
        %v1263 = vld [vmem:[#allocation7 + $0x98] sm:$0xf]
        %v1264 = vld [vmem:[#allocation7 + $0x9c] sm:$0xf]
        %v1265 = vld [vmem:[#allocation7 + $0xa0] sm:$0xf]
        %v1266 = vld [vmem:[#allocation7 + $0xa4] sm:$0xf]
        %v1267 = vld [vmem:[#allocation7 + $0xa8] sm:$0xf]
        %v1268 = vld [vmem:[#allocation7 + $0xac] sm:$0xf]
        %v1269 = vld [vmem:[#allocation7 + $0xb0] sm:$0xf]
        %v1270 = vld [vmem:[#allocation7 + $0xb4] sm:$0xf]
        %v1271 = vld [vmem:[#allocation7 + $0xb8] sm:$0xf]
        %v1272 = vld [vmem:[#allocation7 + $0xbc] sm:$0xf]
        %v1273 = vld [vmem:[#allocation7 + $0xc0] sm:$0xf]
        %v1274 = vld [vmem:[#allocation7 + $0xc4] sm:$0xf]
        %v1275 = vld [vmem:[#allocation7 + $0xc8] sm:$0xf]
        %v1276 = vld [vmem:[#allocation7 + $0xcc] sm:$0xf]
        %v1277 = vld [vmem:[#allocation7 + $0xd0] sm:$0xf]
        %v1278 = vld [vmem:[#allocation7 + $0xd4] sm:$0xf]
        %v1279 = vld [vmem:[#allocation7 + $0xd8] sm:$0xf]
        %v1280 = vld [vmem:[#allocation7 + $0xdc] sm:$0xf]
        %v1281 = vld [vmem:[#allocation7 + $0xe0] sm:$0xf]
        %v1282 = vld [vmem:[#allocation7 + $0xe4] sm:$0xf]
        %v1283 = vld [vmem:[#allocation7 + $0xe8] sm:$0xf]
        %v1284 = vld [vmem:[#allocation7 + $0xec] sm:$0xf]
        %v1285 = vld [vmem:[#allocation7 + $0xf0] sm:$0xf]
        %v1286 = vld [vmem:[#allocation7 + $0xf4] sm:$0xf]
        %v1287 = vld [vmem:[#allocation7 + $0xf8] sm:$0xf]
        %v1288 = vld [vmem:[#allocation7 + $0xfc] sm:$0xf]
        %v1289 = vld [vmem:[#allocation7 + $0x100] sm:$0xf]
        %v1290 = vld [vmem:[#allocation7 + $0x104] sm:$0xf]
        %v1291 = vld [vmem:[#allocation7 + $0x108] sm:$0xf]
        %v1292 = vld [vmem:[#allocation7 + $0x10c] sm:$0xf]
        %v1293 = vld [vmem:[#allocation7 + $0x110] sm:$0xf]
        %v1294 = vld [vmem:[#allocation7 + $0x114] sm:$0xf]
        %v1295 = vld [vmem:[#allocation7 + $0x118] sm:$0xf]
        %v1296 = vld [vmem:[#allocation7 + $0x11c] sm:$0xf]
        %v1297 = vld [vmem:[#allocation7 + $0x120] sm:$0xf]
        %v1298 = vld [vmem:[#allocation7 + $0x124] sm:$0xf]
        %v1299 = vld [vmem:[#allocation7 + $0x128] sm:$0xf]
        %v1300 = vld [vmem:[#allocation7 + $0x12c] sm:$0xf]
        %v1301 = vld [vmem:[#allocation7 + $0x130] sm:$0xf]
        %v1302 = vld [vmem:[#allocation7 + $0x134] sm:$0xf]
        %v1303 = vld [vmem:[#allocation7 + $0x138] sm:$0xf]
        %v1304 = vld [vmem:[#allocation7 + $0x13c] sm:$0xf]
        %v1305 = vld [vmem:[#allocation7 + $0x140] sm:$0xf]
        %v1306 = vld [vmem:[#allocation7 + $0x144] sm:$0xf]
        %v1307 = vld [vmem:[#allocation7 + $0x148] sm:$0xf]
        %v1308 = vld [vmem:[#allocation7 + $0x14c] sm:$0xf]
        %v1309 = vld [vmem:[#allocation7 + $0x150] sm:$0xf]
        %v1310 = vld [vmem:[#allocation7 + $0x154] sm:$0xf]
        %v1311 = vld [vmem:[#allocation7 + $0x158] sm:$0xf]
        %v1312 = vld [vmem:[#allocation7 + $0x15c] sm:$0xf]
        %v1313 = vld [vmem:[#allocation7 + $0x160] sm:$0xf]
        %v1314 = vld [vmem:[#allocation7 + $0x164] sm:$0xf]
        %v1315 = vld [vmem:[#allocation7 + $0x168] sm:$0xf]
        %v1316 = vld [vmem:[#allocation7 + $0x16c] sm:$0xf]
        %v1317 = vld [vmem:[#allocation7 + $0x170] sm:$0xf]
        %v1318 = vld [vmem:[#allocation7 + $0x174] sm:$0xf]
        %v1319 = vld [vmem:[#allocation7 + $0x178] sm:$0xf]
        %v1320 = vld [vmem:[#allocation7 + $0x17c] sm:$0xf]
        %v1321 = vld [vmem:[#allocation7 + $0x180] sm:$0xf]
        %v1322 = vld [vmem:[#allocation7 + $0x184] sm:$0xf]
        %v1323 = vld [vmem:[#allocation7 + $0x188] sm:$0xf]
        %v1324 = vld [vmem:[#allocation7 + $0x18c] sm:$0xf]
        %v1325 = vld [vmem:[#allocation7 + $0x190] sm:$0xf]
        %v1326 = vld [vmem:[#allocation7 + $0x194] sm:$0xf]
        %v1327 = vld [vmem:[#allocation7 + $0x198] sm:$0xf]
        %v1328 = vld [vmem:[#allocation7 + $0x19c] sm:$0xf]
        %v1329 = vld [vmem:[#allocation7 + $0x1a0] sm:$0xf]
        %v1330 = vld [vmem:[#allocation7 + $0x1a4] sm:$0xf]
        %v1331 = vld [vmem:[#allocation7 + $0x1a8] sm:$0xf]
        %v1332 = vld [vmem:[#allocation7 + $0x1ac] sm:$0xf]
        %v1333 = vld [vmem:[#allocation7 + $0x1b0] sm:$0xf]
        %v1334 = vld [vmem:[#allocation7 + $0x1b4] sm:$0xf]
        %v1335 = vld [vmem:[#allocation7 + $0x1b8] sm:$0xf]
        %v1336 = vld [vmem:[#allocation7 + $0x1bc] sm:$0xf]
        %vm1337 = vcmask 1043456
        %v1338 = vrot.slane %v298, 4
        %v1339 = vrot.slane %v299, 4
        %v1340 = vsel %vm1337, %v1338, %v1339
        %v1341 = vrot.slane %v300, 4
        %v1342 = vsel %vm1337, %v1339, %v1341
        %v1345 = vunpack.c.l.bf16 %v1340
        %v1346 = vunpack.c.h.bf16 %v1340
        %v1347 = vunpack.c.l.bf16 %v1342
        %v1348 = vunpack.c.h.bf16 %v1342
        %v1349 = vld [vmem:[%s4] sm:$0x1]
        %v1351 = vlaneseq
        %v1352 = vshrl.u32 %v1351, 7
        %v1353 = vsub.s32 0, %v1352
        %v1354 = vrot.slane %v1349, %v1353
        %v1468 = vunpack.c.l.b16 %v1225
        %v1469 = vunpack.c.l.b16 %v1226
        %v1470 = vunpack.c.l.b16 %v1227
        %v1471 = vunpack.c.l.b16 %v1228
        %v1472 = vunpack.c.l.b16 %v1229
        %v1473 = vunpack.c.l.b16 %v1230
        %v1474 = vunpack.c.l.b16 %v1231
        %v1475 = vunpack.c.l.b16 %v1232
        %v1476 = vunpack.c.l.b16 %v1233
        %v1477 = vunpack.c.l.b16 %v1234
        %v1478 = vunpack.c.l.b16 %v1235
        %v1479 = vunpack.c.l.b16 %v1236
        %v1480 = vunpack.c.l.b16 %v1237
        %v1481 = vunpack.c.l.b16 %v1238
        %v1482 = vunpack.c.l.b16 %v1239
        %v1483 = vunpack.c.l.b16 %v1240
        %v1484 = vunpack.c.l.b16 %v1241
        %v1485 = vunpack.c.l.b16 %v1242
        %v1486 = vunpack.c.l.b16 %v1243
        %v1487 = vunpack.c.l.b16 %v1244
        %v1488 = vunpack.c.l.b16 %v1245
        %v1489 = vunpack.c.l.b16 %v1246
        %v1490 = vunpack.c.l.b16 %v1247
        %v1491 = vunpack.c.l.b16 %v1248
        %v1492 = vunpack.c.l.b16 %v1249
        %v1493 = vunpack.c.l.b16 %v1250
        %v1494 = vunpack.c.l.b16 %v1251
        %v1495 = vunpack.c.l.b16 %v1252
        %v1496 = vunpack.c.l.b16 %v1253
        %v1497 = vunpack.c.l.b16 %v1254
        %v1498 = vunpack.c.l.b16 %v1255
        %v1499 = vunpack.c.l.b16 %v1256
        %v1500 = vunpack.c.l.b16 %v1257
        %v1501 = vunpack.c.l.b16 %v1258
        %v1502 = vunpack.c.l.b16 %v1259
        %v1503 = vunpack.c.l.b16 %v1260
        %v1504 = vunpack.c.l.b16 %v1261
        %v1505 = vunpack.c.l.b16 %v1262
        %v1506 = vunpack.c.l.b16 %v1263
        %v1507 = vunpack.c.l.b16 %v1264
        %v1508 = vunpack.c.l.b16 %v1265
        %v1509 = vunpack.c.l.b16 %v1266
        %v1510 = vunpack.c.l.b16 %v1267
        %v1511 = vunpack.c.l.b16 %v1268
        %v1512 = vunpack.c.l.b16 %v1269
        %v1513 = vunpack.c.l.b16 %v1270
        %v1514 = vunpack.c.l.b16 %v1271
        %v1515 = vunpack.c.l.b16 %v1272
        %v1516 = vunpack.c.l.b16 %v1273
        %v1517 = vunpack.c.l.b16 %v1274
        %v1518 = vunpack.c.l.b16 %v1275
        %v1519 = vunpack.c.l.b16 %v1276
        %v1520 = vunpack.c.l.b16 %v1277
        %v1521 = vunpack.c.l.b16 %v1278
        %v1522 = vunpack.c.l.b16 %v1279
        %v1523 = vunpack.c.l.b16 %v1280
        %v1524 = vunpack.c.l.b16 %v1281
        %v1525 = vunpack.c.l.b16 %v1282
        %v1526 = vunpack.c.l.b16 %v1283
        %v1527 = vunpack.c.l.b16 %v1284
        %v1528 = vunpack.c.l.b16 %v1285
        %v1529 = vunpack.c.l.b16 %v1286
        %v1530 = vunpack.c.l.b16 %v1287
        %v1531 = vunpack.c.l.b16 %v1288
        %v1532 = vunpack.c.l.b16 %v1289
        %v1533 = vunpack.c.l.b16 %v1290
        %v1534 = vunpack.c.l.b16 %v1291
        %v1535 = vunpack.c.l.b16 %v1292
        %v1536 = vunpack.c.l.b16 %v1293
        %v1537 = vunpack.c.l.b16 %v1294
        %v1538 = vunpack.c.l.b16 %v1295
        %v1539 = vunpack.c.l.b16 %v1296
        %v1540 = vunpack.c.l.b16 %v1297
        %v1541 = vunpack.c.l.b16 %v1298
        %v1542 = vunpack.c.l.b16 %v1299
        %v1543 = vunpack.c.l.b16 %v1300
        %v1544 = vunpack.c.l.b16 %v1301
        %v1545 = vunpack.c.l.b16 %v1302
        %v1546 = vunpack.c.l.b16 %v1303
        %v1547 = vunpack.c.l.b16 %v1304
        %v1548 = vunpack.c.l.b16 %v1305
        %v1549 = vunpack.c.l.b16 %v1306
        %v1550 = vunpack.c.l.b16 %v1307
        %v1551 = vunpack.c.l.b16 %v1308
        %v1552 = vunpack.c.l.b16 %v1309
        %v1553 = vunpack.c.l.b16 %v1310
        %v1554 = vunpack.c.l.b16 %v1311
        %v1555 = vunpack.c.l.b16 %v1312
        %v1556 = vunpack.c.l.b16 %v1313
        %v1557 = vunpack.c.l.b16 %v1314
        %v1558 = vunpack.c.l.b16 %v1315
        %v1559 = vunpack.c.l.b16 %v1316
        %v1560 = vunpack.c.l.b16 %v1317
        %v1561 = vunpack.c.l.b16 %v1318
        %v1562 = vunpack.c.l.b16 %v1319
        %v1563 = vunpack.c.l.b16 %v1320
        %v1564 = vunpack.c.l.b16 %v1321
        %v1565 = vunpack.c.l.b16 %v1322
        %v1566 = vunpack.c.l.b16 %v1323
        %v1567 = vunpack.c.l.b16 %v1324
        %v1568 = vunpack.c.l.b16 %v1325
        %v1569 = vunpack.c.l.b16 %v1326
        %v1570 = vunpack.c.l.b16 %v1327
        %v1571 = vunpack.c.l.b16 %v1328
        %v1572 = vunpack.c.l.b16 %v1329
        %v1573 = vunpack.c.l.b16 %v1330
        %v1574 = vunpack.c.l.b16 %v1331
        %v1575 = vunpack.c.l.b16 %v1332
        %v1576 = vunpack.c.l.b16 %v1333
        %v1577 = vunpack.c.l.b16 %v1334
        %v1578 = vunpack.c.l.b16 %v1335
        %v1579 = vunpack.c.l.b16 %v1336
        %v1580 = vpack.c.b16 %v1469, %v1468
        %v1581 = vpack.c.b16 %v1471, %v1470
        %v1582 = vpack.c.b16 %v1473, %v1472
        %v1583 = vpack.c.b16 %v1475, %v1474
        %v1584 = vpack.c.b16 %v1477, %v1476
        %v1585 = vpack.c.b16 %v1479, %v1478
        %v1586 = vpack.c.b16 %v1481, %v1480
        %v1587 = vpack.c.b16 %v1483, %v1482
        %v1588 = vpack.c.b16 %v1485, %v1484
        %v1589 = vpack.c.b16 %v1487, %v1486
        %v1590 = vpack.c.b16 %v1489, %v1488
        %v1591 = vpack.c.b16 %v1491, %v1490
        %v1592 = vpack.c.b16 %v1493, %v1492
        %v1593 = vpack.c.b16 %v1495, %v1494
        %v1594 = vpack.c.b16 %v1497, %v1496
        %v1595 = vpack.c.b16 %v1499, %v1498
        %v1596 = vpack.c.b16 %v1501, %v1500
        %v1597 = vpack.c.b16 %v1503, %v1502
        %v1598 = vpack.c.b16 %v1505, %v1504
        %v1599 = vpack.c.b16 %v1507, %v1506
        %v1600 = vpack.c.b16 %v1509, %v1508
        %v1601 = vpack.c.b16 %v1511, %v1510
        %v1602 = vpack.c.b16 %v1513, %v1512
        %v1603 = vpack.c.b16 %v1515, %v1514
        %v1604 = vpack.c.b16 %v1517, %v1516
        %v1605 = vpack.c.b16 %v1519, %v1518
        %v1606 = vpack.c.b16 %v1521, %v1520
        %v1607 = vpack.c.b16 %v1523, %v1522
        %v1608 = vpack.c.b16 %v1525, %v1524
        %v1609 = vpack.c.b16 %v1527, %v1526
        %v1610 = vpack.c.b16 %v1529, %v1528
        %v1611 = vpack.c.b16 %v1531, %v1530
        %v1612 = vpack.c.b16 %v1533, %v1532
        %v1613 = vpack.c.b16 %v1535, %v1534
        %v1614 = vpack.c.b16 %v1537, %v1536
        %v1615 = vpack.c.b16 %v1539, %v1538
        %v1616 = vpack.c.b16 %v1541, %v1540
        %v1617 = vpack.c.b16 %v1543, %v1542
        %v1618 = vpack.c.b16 %v1545, %v1544
        %v1619 = vpack.c.b16 %v1547, %v1546
        %v1620 = vpack.c.b16 %v1549, %v1548
        %v1621 = vpack.c.b16 %v1551, %v1550
        %v1622 = vpack.c.b16 %v1553, %v1552
        %v1623 = vpack.c.b16 %v1555, %v1554
        %v1624 = vpack.c.b16 %v1557, %v1556
        %v1625 = vpack.c.b16 %v1559, %v1558
        %v1626 = vpack.c.b16 %v1561, %v1560
        %v1627 = vpack.c.b16 %v1563, %v1562
        %v1628 = vpack.c.b16 %v1565, %v1564
        %v1629 = vpack.c.b16 %v1567, %v1566
        %v1630 = vpack.c.b16 %v1569, %v1568
        %v1631 = vpack.c.b16 %v1571, %v1570
        %v1632 = vpack.c.b16 %v1573, %v1572
        %v1633 = vpack.c.b16 %v1575, %v1574
        %v1634 = vpack.c.b16 %v1577, %v1576
        %v1635 = vpack.c.b16 %v1579, %v1578
        %1692 = vmatprep.subr.bf16.mxu0 0
        %1693 = vmatpush1.bf16.msra.mxu0 %v1580
        %1694 = vmatprep.subr.bf16.mxu0 0
        %1695 = vmatpush1.bf16.msra.mxu0 %v1581
        %1696 = vmatprep.subr.bf16.mxu0 0
        %1697 = vmatpush1.bf16.msra.mxu0 %v1582
        %1698 = vmatprep.subr.bf16.mxu0 0
        %1699 = vmatpush1.bf16.msra.mxu0 %v1583
        %1700 = vmatprep.subr.bf16.mxu0 0
        %1701 = vmatpush1.bf16.msra.mxu0 %v1584
        %1702 = vmatprep.subr.bf16.mxu0 0
        %1703 = vmatpush1.bf16.msra.mxu0 %v1585
        %1704 = vmatprep.subr.bf16.mxu0 0
        %1705 = vmatpush1.bf16.msra.mxu0 %v1586
        %1706 = vmatprep.subr.bf16.mxu0 0
        %1707 = vmatpush1.bf16.msra.mxu0 %v1587
        %1708 = vmatprep.subr.bf16.mxu0 0
        %1709 = vmatpush1.bf16.msra.mxu0 %v1588
        %1710 = vmatprep.subr.bf16.mxu0 0
        %1711 = vmatpush1.bf16.msra.mxu0 %v1589
        %1712 = vmatprep.subr.bf16.mxu0 0
        %1713 = vmatpush1.bf16.msra.mxu0 %v1590
        %1714 = vmatprep.subr.bf16.mxu0 0
        %1715 = vmatpush1.bf16.msra.mxu0 %v1591
        %1716 = vmatprep.subr.bf16.mxu0 0
        %1717 = vmatpush1.bf16.msra.mxu0 %v1592
        %1718 = vmatprep.subr.bf16.mxu0 0
        %1719 = vmatpush1.bf16.msra.mxu0 %v1593
        %1720 = vmatprep.subr.bf16.mxu0 0
        %1721 = vmatpush1.bf16.msra.mxu0 %v1594
        %1722 = vmatprep.subr.bf16.mxu0 0
        %1723 = vmatpush1.bf16.msra.mxu0 %v1595
        %1724 = vmatprep.mubr.bf16.mxu0 %v1162
        %1725 = vmatmul.mubr.bf16.gmra.mrb[0].mxu0 %v1148
        %v1726 = vpop.f32.mrb[0].mxu0
        %v1727 = vadd.f32 %v1354, %v1726
        %v1728 = vpop.f32.mrb[0].mxu0
        %v1729 = vpop.f32.mrb[0].mxu0
        %v1730 = vadd.f32 %v1354, %v1729
        %v1731 = vpop.f32.mrb[0].mxu0
        %1732 = vmatprep.mubr.bf16.mxu0 %v1170
        %1733 = vmatmul.mubr.bf16.gmra.mrb[0].mxu0 %v1149
        %v1734 = vpop.f32.mrb[0].mxu0
        %v1735 = vadd.f32 %v1354, %v1734
        %v1736 = vpop.f32.mrb[0].mxu0
        %v1737 = vpop.f32.mrb[0].mxu0
        %v1738 = vadd.f32 %v1354, %v1737
        %v1739 = vpop.f32.mrb[0].mxu0
        %1740 = vdwg.mxu0
        %1741 = vmatprep.subr.bf16.mxu0 0
        %1742 = vmatpush1.bf16.msra.mxu0 %v1596
        %1743 = vmatprep.subr.bf16.mxu0 0
        %1744 = vmatpush1.bf16.msra.mxu0 %v1597
        %1745 = vmatprep.subr.bf16.mxu0 0
        %1746 = vmatpush1.bf16.msra.mxu0 %v1598
        %1747 = vmatprep.subr.bf16.mxu0 0
        %1748 = vmatpush1.bf16.msra.mxu0 %v1599
        %1749 = vmatprep.subr.bf16.mxu0 0
        %1750 = vmatpush1.bf16.msra.mxu0 %v1600
        %1751 = vmatprep.subr.bf16.mxu0 0
        %1752 = vmatpush1.bf16.msra.mxu0 %v1601
        %1753 = vmatprep.subr.bf16.mxu0 0
        %1754 = vmatpush1.bf16.msra.mxu0 %v1602
        %1755 = vmatprep.subr.bf16.mxu0 0
        %1756 = vmatpush1.bf16.msra.mxu0 %v1603
        %1757 = vmatprep.subr.bf16.mxu0 0
        %1758 = vmatpush1.bf16.msra.mxu0 %v1604
        %1759 = vmatprep.subr.bf16.mxu0 0
        %1760 = vmatpush1.bf16.msra.mxu0 %v1605
        %1761 = vmatprep.subr.bf16.mxu0 0
        %1762 = vmatpush1.bf16.msra.mxu0 %v1606
        %1763 = vmatprep.subr.bf16.mxu0 0
        %1764 = vmatpush1.bf16.msra.mxu0 %v1607
        %1765 = vmatprep.subr.bf16.mxu0 0
        %1766 = vmatpush1.bf16.msra.mxu0 %v1608
        %1767 = vmatprep.subr.bf16.mxu0 0
        %1768 = vmatpush1.bf16.msra.mxu0 %v1609
        %1769 = vmatprep.subr.bf16.mxu0 0
        %1770 = vmatpush1.bf16.msra.mxu0 %v1610
        %1771 = vmatprep.subr.bf16.mxu0 0
        %1772 = vmatpush1.bf16.msra.mxu0 %v1611
        %1773 = vmatprep.mubr.bf16.mxu0 %v1189
        %1774 = vmatmul.mubr.bf16.gmra.mrb[0].mxu0 %v1178
        %v1775 = vpop.f32.mrb[0].mxu0
        %v1776 = vadd.f32 %v1727, %v1775
        %v1777 = vpop.f32.mrb[0].mxu0
        %v1778 = vpop.f32.mrb[0].mxu0
        %v1779 = vadd.f32 %v1730, %v1778
        %v1780 = vpop.f32.mrb[0].mxu0
        %1781 = vmatprep.mubr.bf16.mxu0 %v1195
        %1782 = vmatmul.mubr.bf16.gmra.mrb[0].mxu0 %v1180
        %v1783 = vpop.f32.mrb[0].mxu0
        %v1784 = vadd.f32 %v1735, %v1783
        %v1785 = vpop.f32.mrb[0].mxu0
        %v1786 = vpop.f32.mrb[0].mxu0
        %v1787 = vadd.f32 %v1738, %v1786
        %v1788 = vpop.f32.mrb[0].mxu0
        %1789 = vdwg.mxu0
        %1790 = vmatprep.subr.bf16.mxu0 0
        %1791 = vmatpush1.bf16.msra.mxu0 %v1612
        %1792 = vmatprep.subr.bf16.mxu0 0
        %1793 = vmatpush1.bf16.msra.mxu0 %v1613
        %1794 = vmatprep.subr.bf16.mxu0 0
        %1795 = vmatpush1.bf16.msra.mxu0 %v1614
        %1796 = vmatprep.subr.bf16.mxu0 0
        %1797 = vmatpush1.bf16.msra.mxu0 %v1615
        %1798 = vmatprep.subr.bf16.mxu0 0
        %1799 = vmatpush1.bf16.msra.mxu0 %v1616
        %1800 = vmatprep.subr.bf16.mxu0 0
        %1801 = vmatpush1.bf16.msra.mxu0 %v1617
        %1802 = vmatprep.subr.bf16.mxu0 0
        %1803 = vmatpush1.bf16.msra.mxu0 %v1618
        %1804 = vmatprep.subr.bf16.mxu0 0
        %1805 = vmatpush1.bf16.msra.mxu0 %v1619
        %1806 = vmatprep.subr.bf16.mxu0 0
        %1807 = vmatpush1.bf16.msra.mxu0 %v1620
        %1808 = vmatprep.subr.bf16.mxu0 0
        %1809 = vmatpush1.bf16.msra.mxu0 %v1621
        %1810 = vmatprep.subr.bf16.mxu0 0
        %1811 = vmatpush1.bf16.msra.mxu0 %v1622
        %1812 = vmatprep.subr.bf16.mxu0 0
        %1813 = vmatpush1.bf16.msra.mxu0 %v1623
        %1814 = vmatprep.subr.bf16.mxu0 0
        %1815 = vmatpush1.bf16.msra.mxu0 %v1624
        %1816 = vmatprep.subr.bf16.mxu0 0
        %1817 = vmatpush1.bf16.msra.mxu0 %v1625
        %1818 = vmatprep.subr.bf16.mxu0 0
        %1819 = vmatpush1.bf16.msra.mxu0 %v1626
        %1820 = vmatprep.subr.bf16.mxu0 0
        %1821 = vmatpush1.bf16.msra.mxu0 %v1627
        %1822 = vmatprep.mubr.bf16.mxu0 %v1211
        %1823 = vmatmul.mubr.bf16.gmra.mrb[0].mxu0 %v1200
        %v1824 = vpop.f32.mrb[0].mxu0
        %v1825 = vadd.f32 %v1776, %v1824
        %v1826 = vpop.f32.mrb[0].mxu0
        %v1827 = vpop.f32.mrb[0].mxu0
        %v1828 = vadd.f32 %v1779, %v1827
        %v1829 = vpop.f32.mrb[0].mxu0
        %1830 = vmatprep.mubr.bf16.mxu0 %v1215
        %1831 = vmatmul.mubr.bf16.gmra.mrb[0].mxu0 %v1202
        %v1832 = vpop.f32.mrb[0].mxu0
        %v1833 = vadd.f32 %v1784, %v1832
        %v1834 = vpop.f32.mrb[0].mxu0
        %v1835 = vpop.f32.mrb[0].mxu0
        %v1836 = vadd.f32 %v1787, %v1835
        %v1837 = vpop.f32.mrb[0].mxu0
        %1838 = vdwg.mxu0
        %1839 = vmatprep.subr.bf16.mxu0 0
        %1840 = vmatpush1.bf16.msra.mxu0 %v1628
        %1841 = vmatprep.subr.bf16.mxu0 0
        %1842 = vmatpush1.bf16.msra.mxu0 %v1629
        %1843 = vmatprep.subr.bf16.mxu0 0
        %1844 = vmatpush1.bf16.msra.mxu0 %v1630
        %1845 = vmatprep.subr.bf16.mxu0 0
        %1846 = vmatpush1.bf16.msra.mxu0 %v1631
        %1847 = vmatprep.subr.bf16.mxu0 0
        %1848 = vmatpush1.bf16.msra.mxu0 %v1632
        %1849 = vmatprep.subr.bf16.mxu0 0
        %1850 = vmatpush1.bf16.msra.mxu0 %v1633
        %1851 = vmatprep.subr.bf16.mxu0 0
        %1852 = vmatpush1.bf16.msra.mxu0 %v1634
        %1853 = vmatprep.subr.bf16.mxu0 0
        %1854 = vmatpush1.bf16.msra.mxu0 %v1635
        %1855 = vmatprep.subr.bf16.mxu0 0
        %1856 = vmatpush1.bf16.msra.mxu0 0
        %1857 = vmatprep.subr.bf16.mxu0 0
        %1858 = vmatpush1.bf16.msra.mxu0 0
        %1859 = vmatprep.subr.bf16.mxu0 0
        %1860 = vmatpush1.bf16.msra.mxu0 0
        %1861 = vmatprep.subr.bf16.mxu0 0
        %1862 = vmatpush1.bf16.msra.mxu0 0
        %1863 = vmatprep.subr.bf16.mxu0 0
        %1864 = vmatpush1.bf16.msra.mxu0 0
        %1865 = vmatprep.subr.bf16.mxu0 0
        %1866 = vmatpush1.bf16.msra.mxu0 0
        %1867 = vmatprep.subr.bf16.mxu0 0
        %1868 = vmatpush1.bf16.msra.mxu0 0
        %1869 = vmatprep.subr.bf16.mxu0 0
        %1870 = vmatpush1.bf16.msra.mxu0 0
        %1871 = vmatprep.mubr.bf16.mxu0 0
        %1872 = vmatmul.mubr.bf16.gmra.mrb[0].mxu0 %v1220
        %v1873 = vpop.f32.mrb[0].mxu0
        %v1874 = vadd.f32 %v1825, %v1873
        %v1875 = vpop.f32.mrb[0].mxu0
        %v1876 = vpop.f32.mrb[0].mxu0
        %v1877 = vadd.f32 %v1828, %v1876
        %v1878 = vpop.f32.mrb[0].mxu0
        %1879 = vmatprep.mubr.bf16.mxu0 0
        %1880 = vmatmul.mubr.bf16.gmra.mrb[0].mxu0 %v1222
        %v1881 = vpop.f32.mrb[0].mxu0
        %v1882 = vadd.f32 %v1833, %v1881
        %v1883 = vpop.f32.mrb[0].mxu0
        %v1884 = vpop.f32.mrb[0].mxu0
        %v1885 = vadd.f32 %v1836, %v1884
        %v1886 = vpop.f32.mrb[0].mxu0
        %1887 = vdwg.mxu0
        %v1888 = vadd.f32 %v1874, %v1345
        %v1889 = vadd.f32 %v1877, %v1346
        %v1890 = vadd.f32 %v1882, %v1347
        %v1891 = vadd.f32 %v1885, %v1348
        %v1892 = vmax.f32 %v1888, 0.0
        %v1893 = vmax.f32 %v1889, 0.0
        %v1894 = vmax.f32 %v1890, 0.0
        %v1895 = vmax.f32 %v1891, 0.0
        %1896 = vst [vmem:[%s220] sm:$0xff] %v1892
        %1897 = vst [vmem:[%s220 + $0x8] sm:$0xff] %v1893
        %1898 = vst [vmem:[%s220 + $0x10] sm:$0xff] %v1894
        %1899 = vst [vmem:[%s220 + $0x18] sm:$0xff] %v1895
        %s1900 = sand.u32 %s127, 1
        %s1901 = scalar_lea.sflag [#allocation6], %s1900
        %s1902 = sand.u32 %s127, 1
        %s1903 = smul.addr %s1902, 32
        %s1904 = scalar_lea.vmem [#allocation9], %s1903
        // Predicated region
        $region61: #{tpu_custom_call.1} parent=35 // pred_check
          %p1905 = pneg %p137
        $region62: #{tpu_custom_call.1} parent=35 // pred_check_branch
          %1907 = sbr.rel (%p1905) target = $region64
        $region63: #{tpu_custom_call.1} parent=35 // pred_region
          %s1908 = smul.u32 4, %s26
          %s1910 = ssub.s32 512, 512
          %1911 = vsyncadd %s1901, %s1910
          %s1912 = smul.addr %s25, 12
          %s1913 = sadd.s32 %s1908, %s1912
          %s1914 = smul.addr %s1913, 128
          %s1915 = scalar_lea.hbm %s5, %s1914
          %s1916 = sshll.u32 %s1904, 4
          %s1917 = int_to_ptr.vmem [resolvable:$true] %s1916
          %1922 = dma.vmem_to_hbm [thread:$0]  %s1917, 512, %s1915, %s1901, 128, 128, 8
        $region64: #{tpu_custom_call.1} parent=35 // pred_fallthru
          _
      $region36: #{tpu_custom_call.1} parent=5 // pred_fallthru
        _
      %p1923 = scmp.le.s32.totalorder 2, %s16
      // Predicated region
      $region65: #{tpu_custom_call.1} parent=5 // pred_check
        %p1924 = pneg %p1923
      $region66: #{tpu_custom_call.1} parent=5 // pred_check_branch
        %1926 = sbr.rel (%p1924) target = $region68
      $region67: #{tpu_custom_call.1} parent=5 // pred_region
        %s1927 = ssub.s32 %s16, 2
        // Predicated region
        $region69: #{tpu_custom_call.1} parent=67 // pred_check
          %p1928 = pneg %p143
        $region70: #{tpu_custom_call.1} parent=67 // pred_check_branch
          %1930 = sbr.rel (%p1928) target = $region72
        $region71: #{tpu_custom_call.1} parent=67 // pred_region
          %s1931 = sand.u32 %s128, 1
          %s1932 = scalar_lea.sflag [#allocation6], %s1931
          %s1933 = sand.u32 %s128, 1
          %s1934 = smul.addr %s1933, 32
          %s1935 = scalar_lea.vmem [#allocation9], %s1934
          %1936 = dma.done %s1932, 512
        $region72: #{tpu_custom_call.1} parent=67 // pred_fallthru
          _
      $region68: #{tpu_custom_call.1} parent=5 // pred_fallthru
        _
    $region6: #{tpu_custom_call.1} parent=1 // loop_footer
      %s20 = sadd.s32 1, %s16
    $region7: #{tpu_custom_call.1} parent=1 // loop_footer_branch
      %15 = sbr.rel target = $region3
    $region8: #{tpu_custom_call.1} parent=1 // loop_exit
      _
    %1937 = vsyncpa [#allocation5], 1
    %s1938 = scalar_lea.sflag [#allocation5], 1
    %1939 = vsyncpa %s1938, 1
    %1940 = vsyncpa [#allocation8], 1
    %1941 = vsyncpa [#allocation6], 1
    %s1942 = scalar_lea.sflag [#allocation6], 1
    %1943 = vsyncpa %s1942, 1
  %1944 = vsyncmov [#allocation3]
  %s1945 = vpop.sfrf %1944
  %p1946 = scmp.eq.s32.totalorder %s1945, 0
  %p1947 = pneg %p1946
  %1949 = shalt.err (%p1947)
  %s1950 = scalar_lea.sflag [#allocation3], 1
  %1951 = vsyncmov %s1950
  %s1952 = vpop.sfrf %1951
  %p1953 = scmp.eq.s32.totalorder %s1952, 0
  %p1954 = pneg %p1953
  %1956 = shalt.err (%p1954)

</llo_original>
